<compile_context>
chip_gen: v7x
topology: tpu7x:2x2x1
jax: 0.10.0
libtpu: 0.0.40
codegen_flags: <defaults>
</compile_context>

<pallas_src>
import functools

import numpy as np
import jax
import jax.numpy as jnp
from jax.experimental import pallas as pl
from jax.experimental.pallas import tpu as pltpu  # noqa: F401  (TPU backend)

# ---------------- configuration (small synthetic sizes) ----------------
IN_CHANNELS = 64      # roi feature dim (in_channels / obj_dim)
EMBED_DIM   = 32      # obj_embed dim
HIDDEN_DIM  = 32      # d_model of the transformer encoder
INNER_DIM   = 64      # FFN inner dim
NUM_HEAD    = 2
KEY_DIM     = 16      # d_k
VAL_DIM     = 16      # d_v
OBJ_LAYER   = 2       # number of encoder layers
NUM_OBJ_CLS = 11
LN_EPS      = 1e-5    # torch.nn.LayerNorm default
LANE        = 128
CLS_PAD     = 16      # padded width of the logits / box_info halves of `aux`
QKV_WIDTH   = NUM_HEAD * (2 * KEY_DIM + VAL_DIM)   # 96
NEG_INF     = -1e30


def _round_up(x, m):
    return (x + m - 1) // m * m


def _full_spec(shape):
    nd = len(shape)
    return pl.BlockSpec(shape, lambda *_, nd=nd: (0,) * nd)


def _layer_norm(x, g, b):
    mu = jnp.mean(x, axis=-1, keepdims=True)
    var = jnp.mean((x - mu) ** 2, axis=-1, keepdims=True)
    return (x - mu) * jax.lax.rsqrt(var + LN_EPS) * g + b


def _softmax_lastdim(x):
    # exp / EUP-reciprocal softmax (divide -> reciprocal on the otherwise-idle EUP slot)
    x = x - jnp.max(x, axis=-1, keepdims=True)
    e = jnp.exp(x)
    return e * pl.reciprocal(jnp.sum(e, axis=-1, keepdims=True), approx=True)


# ---------------- single fused Pallas kernel ----------------
def _fused_forward_kernel(
        roi_ref, aux_ref, w32_ref, w128_ref, nbias_ref,
        wqkv_ref, wfc1_ref, w2_ref, lbias_ref,
        out_ref,
        *, n_head, d_k, d_v, d_model, d_inner, n_layers, seg_offsets, np_rows):
    f32, bf16 = jnp.float32, jnp.bfloat16

    # ---- obj_embed = softmax(predict_logits) @ obj_embed1.weight
    # logits live in aux[:, :16]; pad columns were pre-filled with -1e30 so they get
    # exactly zero probability; obj_embed1 slab rows 11:16 are zero.
    probs = _softmax_lastdim(aux_ref[:, 0:CLS_PAD].astype(f32))
    obj_embed = jnp.dot(probs.astype(bf16), w32_ref[0:16, :],
                        preferred_element_type=f32)

    # ---- bbox_embed MLP: Linear(9,32)+ReLU, Linear(32,128)+ReLU (eval: no dropout)
    box = aux_ref[:, CLS_PAD:2 * CLS_PAD].astype(bf16)     # zero-padded 9 -> 16 cols
    hbx = jnp.dot(box, w32_ref[16:32, :], preferred_element_type=f32) \
        + nbias_ref[0:1, 0:32]
    hbx = jnp.maximum(hbx, 0.0)
    pos_embed = jnp.dot(hbx.astype(bf16), w128_ref[0:32, :],
                        preferred_element_type=f32) + nbias_ref[1:2, :]
    pos_embed = jnp.maximum(pos_embed, 0.0)

    # ---- lin_obj(concat([roi, obj_embed, pos_embed])) as split matmuls (no lane concat)
    x = (jnp.dot(roi_ref[...].astype(bf16), w32_ref[32:96, :], preferred_element_type=f32)
         + jnp.dot(obj_embed.astype(bf16), w32_ref[96:128, :], preferred_element_type=f32)
         + jnp.dot(pos_embed.astype(bf16), w32_ref[128:256, :], preferred_element_type=f32)
         + nbias_ref[2:3, 0:d_model])

    # ---- block-diagonal attention mask as an additive f32 bias, built ONCE from iota +
    # static per-image cumulative offsets (no mask DMA, no per-layer select).
    row_id = jax.lax.broadcasted_iota(jnp.int32, (np_rows, np_rows), 0)
    col_id = jax.lax.broadcasted_iota(jnp.int32, (np_rows, np_rows), 1)
    row_seg = jnp.zeros((np_rows, np_rows), jnp.int32)
    col_seg = jnp.zeros((np_rows, np_rows), jnp.int32)
    for boundary in seg_offsets:                       # static python loop (trace time)
        row_seg = row_seg + (row_id >= boundary).astype(jnp.int32)
        col_seg = col_seg + (col_id >= boundary).astype(jnp.int32)
    mask_bias = jnp.where(row_seg == col_seg, jnp.float32(0.0), jnp.float32(NEG_INF))

    inv_temp = jnp.float32(1.0 / (float(d_k) ** 0.5))
    hk = n_head * d_k

    # ---- transformer encoder layers (weights resident in VMEM, loop unrolled)
    for l in range(n_layers):
        lb = lbias_ref[l]                              # (8,128) packed biases / LN params
        bqkv = lb[0:1, 0:QKV_WIDTH]
        fcb = lb[1:2, 0:d_model]
        ln1g, ln1b = lb[2:3, 0:d_model], lb[3:4, 0:d_model]
        b1 = lb[4:5, 0:d_inner]
        b2 = lb[5:6, 0:d_model]
        ln2g, ln2b = lb[6:7, 0:d_model], lb[7:8, 0:d_model]

        # fused Q|K|V projection: one (NP, d_model) @ (d_model, 96) matmul per layer
        qkv = jnp.dot(x.astype(bf16), wqkv_ref[l], preferred_element_type=f32) + bqkv

        head_outs = []
        for hd in range(n_head):                       # H=2, unrolled
            qh = qkv[:, hd * d_k:(hd + 1) * d_k]
            kh = qkv[:, hk + hd * d_k: hk + (hd + 1) * d_k]
            vh = qkv[:, 2 * hk + hd * d_v: 2 * hk + (hd + 1) * d_v]
            s = jnp.einsum('qd,kd->qk', qh, kh, preferred_element_type=f32) * inv_temp
            p = _softmax_lastdim(s + mask_bias)        # masked_fill(-inf) + softmax
            head_outs.append(jnp.dot(p, vh, preferred_element_type=f32))
        o = jnp.concatenate(head_outs, axis=-1)        # (NP, n_head*d_v)

        wfc1 = wfc1_ref[l]                             # (32, 96) = [fc(32) | w1(64)]
        attn = jnp.dot(o.astype(bf16), wfc1[:, 0:d_model],
                       preferred_element_type=f32) + fcb
        y = _layer_norm(attn + x, ln1g, ln1b)

        h1 = jnp.dot(y.astype(bf16), wfc1[:, d_model:d_model + d_inner],
                     preferred_element_type=f32) + b1
        h1 = jnp.maximum(h1, 0.0)
        h2 = jnp.dot(h1.astype(bf16), w2_ref[l], preferred_element_type=f32) + b2
        x = _layer_norm(h2 + y, ln2g, ln2b)

    # ---- out_obj (lane-padded to 128) + single lane-dense packed output slab:
    #      [ pos_embed(128) | obj_feats padded to 128 | obj_dists padded to 128 ]
    dist = jnp.dot(x.astype(bf16), w128_ref[32:64, :], preferred_element_type=f32) \
        + nbias_ref[3:4, :]
    feat_pad = jnp.concatenate([x, jnp.zeros((np_rows, LANE - d_model), f32)], axis=-1)
    out_ref[...] = jnp.concatenate([pos_embed, feat_pad, dist], axis=-1)


def fused_forward(fp, roi_p, aux_p, seg_offsets):
    np_rows = roi_p.shape[0]
    inputs = (roi_p, aux_p, fp['w32'], fp['w128'], fp['nbias'],
              fp['wqkv'], fp['wfc1'], fp['w2'], fp['lbias'])
    kernel = functools.partial(
        _fused_forward_kernel,
        n_head=NUM_HEAD, d_k=KEY_DIM, d_v=VAL_DIM, d_model=HIDDEN_DIM,
        d_inner=INNER_DIM, n_layers=OBJ_LAYER,
        seg_offsets=seg_offsets, np_rows=np_rows)
    # TODO(synk): for large NP (esp. v7x: 64 MiB VMEM, 2 TCs) switch to a query-blocked
    # grid with dimension_semantics=("parallel",) and flash-style online softmax.
    return pl.pallas_call(
        kernel,
        out_shape=jax.ShapeDtypeStruct((np_rows, 3 * LANE), jnp.float32),
        in_specs=[_full_spec(a.shape) for a in inputs],
        out_specs=_full_spec((np_rows, 3 * LANE)),
    )(*inputs)


# ---------------- plain-JAX glue (vectorized, no per-image loops) ----------------
def encode_box_info(boxes, img_sizes):
    # boxes: (N, 4) xyxy ; img_sizes: (N, 2) = (width, height) of owning image
    wid = img_sizes[:, 0:1]
    hei = img_sizes[:, 1:2]
    x1, y1, x2, y2 = boxes[:, 0:1], boxes[:, 1:2], boxes[:, 2:3], boxes[:, 3:4]
    w = x2 - x1 + 1.0
    h = y2 - y1 + 1.0
    xc = x1 + 0.5 * w
    yc = y1 + 0.5 * h
    return jnp.concatenate([w / wid, h / hei, xc / wid, yc / hei,
                            x1 / wid, y1 / hei, x2 / wid, y2 / hei,
                            w * h / (wid * hei)], axis=-1)            # (N, 9)


@functools.partial(jax.jit, static_argnames=('num_objs',))
def transformer_obj_context_forward(fparams, roi_features, obj_logits,
                                    boxes, img_sizes, num_objs):
    # mode = 'sgcls' (USE_GT_BOX=True, USE_GT_OBJECT_LABEL=False), eval mode.
    n = roi_features.shape[0]
    np_rows = _round_up(n, 8)
    pad = np_rows - n
    seg_offsets = tuple(int(v) for v in np.cumsum(num_objs))   # static (trace-time)

    # merge box_info (9) + logits (11) into one (N, 32) aux input; -1e30 in the logit
    # pad columns so the in-kernel 16-wide softmax matches the 11-class softmax exactly.
    box_info = encode_box_info(boxes, img_sizes)
    logits_pad = jnp.concatenate(
        [obj_logits, jnp.full((n, CLS_PAD - NUM_OBJ_CLS), NEG_INF, jnp.float32)], axis=-1)
    box_pad = jnp.concatenate(
        [box_info, jnp.zeros((n, CLS_PAD - 9), jnp.float32)], axis=-1)
    aux = jnp.concatenate([logits_pad, box_pad], axis=-1)             # (N, 32)

    roi_p = jnp.pad(roi_features, ((0, pad), (0, 0)))
    aux_p = jnp.pad(aux, ((0, pad), (0, 0)))

    packed = fused_forward(fparams, roi_p, aux_p, seg_offsets)        # (NP, 384)

    pos_embed = packed[:n, 0:LANE]
    obj_feats = packed[:n, LANE:LANE + HIDDEN_DIM]
    obj_dists = packed[:n, 2 * LANE:2 * LANE + NUM_OBJ_CLS]
    obj_preds = jnp.argmax(obj_dists[:, 1:], axis=1) + 1              # skip bg class
    obj_embed_out = jnp.take(fparams['emb2'], obj_preds, axis=0)      # obj_embed2 gather
    # TODO(synk): nms_per_cls (sgdet-eval greedy per-class NMS, data-dependent numpy loop)
    # and the predcls one-hot branch are not translated; this implements the sgcls eval path.
    return obj_dists, obj_preds, obj_feats, obj_embed_out, pos_embed


# ---------------- deterministic parameter init (PyTorch-style layout) ----------------
def init_params(key):
    ks = iter(jax.random.split(key, 64))

    def nrm(shape, std=0.1):
        return std * jax.random.normal(next(ks), shape, jnp.float32)

    embed_vecs = nrm((NUM_OBJ_CLS, EMBED_DIM))
    params = {
        'obj_embed1': embed_vecs,
        'obj_embed2': embed_vecs,          # both embeddings copy the same embed_vecs
        'bbox_w1': nrm((9, 32)), 'bbox_b1': nrm((1, 32)),
        'bbox_w2': nrm((32, 128)), 'bbox_b2': nrm((1, 128)),
        'lin_obj_w': nrm((IN_CHANNELS + EMBED_DIM + 128, HIDDEN_DIM)),
        'lin_obj_b': nrm((1, HIDDEN_DIM)),
        'out_obj_w': nrm((HIDDEN_DIM, NUM_OBJ_CLS)),
        'out_obj_b': nrm((1, NUM_OBJ_CLS)),
        'layers': [],
    }
    for _ in range(OBJ_LAYER):
        lp = {
            'wq': nrm((HIDDEN_DIM, NUM_HEAD * KEY_DIM)), 'bq': nrm((1, NUM_HEAD * KEY_DIM)),
            'wk': nrm((HIDDEN_DIM, NUM_HEAD * KEY_DIM)), 'bk': nrm((1, NUM_HEAD * KEY_DIM)),
            'wv': nrm((HIDDEN_DIM, NUM_HEAD * VAL_DIM)), 'bv': nrm((1, NUM_HEAD * VAL_DIM)),
            'fcw': nrm((NUM_HEAD * VAL_DIM, HIDDEN_DIM)), 'fcb': nrm((1, HIDDEN_DIM)),
            'ln1g': jnp.ones((1, HIDDEN_DIM), jnp.float32),
            'ln1b': jnp.zeros((1, HIDDEN_DIM), jnp.float32),
            'w1': nrm((HIDDEN_DIM, INNER_DIM)), 'b1': nrm((1, INNER_DIM)),
            'w2': nrm((INNER_DIM, HIDDEN_DIM)), 'b2': nrm((1, HIDDEN_DIM)),
            'ln2g': jnp.ones((1, HIDDEN_DIM), jnp.float32),
            'ln2b': jnp.zeros((1, HIDDEN_DIM), jnp.float32),
        }
        params['layers'].append(lp)
    return params


def prepare_fused_params(params):
    """Repack PyTorch-layout params into a few lane-dense slabs for the fused kernel."""
    bf16, f32 = jnp.bfloat16, jnp.float32

    def row128(vec):
        v = jnp.asarray(vec, f32).reshape(-1)
        return jnp.pad(v, (0, LANE - v.shape[0]))[None, :]

    # w32 slab (256, 32): [emb1(pad16) | bbox_w1(pad16) | lin_roi(64) | lin_emb(32) | lin_pos(128)]
    emb1_p = jnp.pad(params['obj_embed1'], ((0, CLS_PAD - NUM_OBJ_CLS), (0, 0)))
    bw1_p = jnp.pad(params['bbox_w1'], ((0, CLS_PAD - 9), (0, 0)))
    lin_w = params['lin_obj_w']
    w32 = jnp.concatenate(
        [emb1_p, bw1_p,
         lin_w[:IN_CHANNELS],
         lin_w[IN_CHANNELS:IN_CHANNELS + EMBED_DIM],
         lin_w[IN_CHANNELS + EMBED_DIM:]], axis=0).astype(bf16)

    # w128 slab (64, 128): [bbox_w2 | out_obj_w lane-padded to 128]
    out_w_p = jnp.pad(params['out_obj_w'], ((0, 0), (0, LANE - NUM_OBJ_CLS)))
    w128 = jnp.concatenate([params['bbox_w2'], out_w_p], axis=0).astype(bf16)

    # non-layer bias slab (8, 128): bbox_b1 | bbox_b2 | lin_b | out_b | zeros
    nbias = jnp.concatenate(
        [row128(params['bbox_b1']), row128(params['bbox_b2']),
         row128(params['lin_obj_b']), row128(params['out_obj_b']),
         jnp.zeros((4, LANE), f32)], axis=0)

    wqkv, wfc1, w2, lbias = [], [], [], []
    for lp in params['layers']:
        wqkv.append(jnp.concatenate([lp['wq'], lp['wk'], lp['wv']], axis=1))   # (32, 96)
        wfc1.append(jnp.concatenate([lp['fcw'], lp['w1']], axis=1))            # (32, 96)
        w2.append(lp['w2'])                                                    # (64, 32)
        bqkv = jnp.concatenate(
            [lp['bq'].reshape(-1), lp['bk'].reshape(-1), lp['bv'].reshape(-1)])
        lbias.append(jnp.concatenate(
            [row128(bqkv), row128(lp['fcb']), row128(lp['ln1g']), row128(lp['ln1b']),
             row128(lp['b1']), row128(lp['b2']), row128(lp['ln2g']), row128(lp['ln2b'])],
            axis=0))                                                            # (8, 128)

    return {
        'emb2': params['obj_embed2'],
        'w32': w32, 'w128': w128, 'nbias': nbias,
        'wqkv': jnp.stack(wqkv).astype(bf16),
        'wfc1': jnp.stack(wfc1).astype(bf16),
        'w2': jnp.stack(w2).astype(bf16),
        'lbias': jnp.stack(lbias),
    }


if __name__ == "__main__":
    key = jax.random.PRNGKey(0)
    pkey, dkey = jax.random.split(key)
    params = init_params(pkey)
    fparams = prepare_fused_params(params)

    num_objs = (8, 5)          # boxes per image (static)
    N = sum(num_objs)
    k1, k2, k3 = jax.random.split(dkey, 3)
    roi_features = jax.random.normal(k1, (N, IN_CHANNELS), jnp.float32)
    obj_logits = jax.random.normal(k2, (N, NUM_OBJ_CLS), jnp.float32)
    raw = jax.random.uniform(k3, (N, 4), jnp.float32)
    x1 = raw[:, 0:1] * 32.0
    y1 = raw[:, 1:2] * 24.0
    x2 = x1 + 1.0 + raw[:, 2:3] * 30.0
    y2 = y1 + 1.0 + raw[:, 3:4] * 20.0
    boxes = jnp.concatenate([x1, y1, x2, y2], axis=-1)
    img_sizes = jnp.tile(jnp.array([[64.0, 48.0]], jnp.float32), (N, 1))

    outs = transformer_obj_context_forward(fparams, roi_features, obj_logits,
                                           boxes, img_sizes, num_objs=num_objs)
    outs = jax.block_until_ready(outs)
    obj_dists, obj_preds, obj_feats, obj_embed_out, pos_embed = outs
    assert obj_dists.shape == (N, NUM_OBJ_CLS)
    assert obj_preds.shape == (N,)
    assert obj_feats.shape == (N, HIDDEN_DIM)
    assert obj_embed_out.shape == (N, EMBED_DIM)
    assert pos_embed.shape == (N, 128)
    assert bool(jnp.all(jnp.isfinite(obj_dists)))
    assert bool(jnp.all(jnp.isfinite(obj_feats)))
    assert bool(jnp.all(jnp.isfinite(pos_embed)))
    print("KERNEL_OK")
</pallas_src>

<mosaic_0001>
module attributes {stable_mosaic.version = 11 : i64} {
  func.func @_fused_forward_kernel(%arg0: memref<16x64xf32, #tpu.memory_space<vmem>>, %arg1: memref<16x32xf32, #tpu.memory_space<vmem>>, %arg2: memref<256x32xbf16, #tpu.memory_space<vmem>>, %arg3: memref<64x128xbf16, #tpu.memory_space<vmem>>, %arg4: memref<8x128xf32, #tpu.memory_space<vmem>>, %arg5: memref<2x32x96xbf16, #tpu.memory_space<vmem>>, %arg6: memref<2x32x96xbf16, #tpu.memory_space<vmem>>, %arg7: memref<2x64x32xbf16, #tpu.memory_space<vmem>>, %arg8: memref<2x8x128xf32, #tpu.memory_space<vmem>>, %arg9: memref<16x384xf32, #tpu.memory_space<vmem>>) attributes {dimension_semantics = [], scalar_prefetch = 0 : i64, scratch_operands = 0 : i64, tpu.core_type = #tpu.core_type<tc>} {
    %c0 = arith.constant 0 : index
    %c0_0 = arith.constant 0 : index
    %0 = vector.load %arg1[%c0, %c0_0] : memref<16x32xf32, #tpu.memory_space<vmem>>, vector<16x16xf32>
    %cst = arith.constant dense<0xFF800000> : vector<16xf32>
    %1 = vector.multi_reduction <maximumf>, %0, %cst [1] : vector<16x16xf32> to vector<16xf32>
    %2 = vector.shape_cast %1 : vector<16xf32> to vector<16x1xf32>
    %3 = vector.broadcast %2 : vector<16x1xf32> to vector<16x16xf32>
    %4 = arith.subf %0, %3 : vector<16x16xf32>
    %5 = math.exp %4 : vector<16x16xf32>
    %cst_1 = arith.constant dense<0.000000e+00> : vector<16xf32>
    %6 = vector.multi_reduction <add>, %5, %cst_1 [1] : vector<16x16xf32> to vector<16xf32>
    %7 = vector.shape_cast %6 : vector<16xf32> to vector<16x1xf32>
    %8 = tpu.reciprocal %7 {approx = true} : vector<16x1xf32> -> vector<16x1xf32>
    %9 = vector.broadcast %8 : vector<16x1xf32> to vector<16x16xf32>
    %10 = arith.mulf %5, %9 : vector<16x16xf32>
    %11 = arith.truncf %10 : vector<16x16xf32> to vector<16x16xbf16>
    %c0_2 = arith.constant 0 : index
    %c0_3 = arith.constant 0 : index
    %12 = vector.load %arg2[%c0_2, %c0_3] : memref<256x32xbf16, #tpu.memory_space<vmem>>, vector<16x32xbf16>
    %cst_4 = arith.constant dense<0.000000e+00> : vector<16x32xf32>
    %13 = tpu.matmul %11, %12, %cst_4 {dimension_numbers = #tpu.dot_dimension_numbers<[1], [0], [0], [1], [0, 0, 1, 1], [], []>} : vector<16x16xbf16>, vector<16x32xbf16>, vector<16x32xf32> -> vector<16x32xf32>
    %c0_5 = arith.constant 0 : index
    %c16 = arith.constant 16 : index
    %14 = vector.load %arg1[%c0_5, %c16] : memref<16x32xf32, #tpu.memory_space<vmem>>, vector<16x16xf32>
    %15 = arith.truncf %14 : vector<16x16xf32> to vector<16x16xbf16>
    %c16_6 = arith.constant 16 : index
    %c0_7 = arith.constant 0 : index
    %16 = vector.load %arg2[%c16_6, %c0_7] : memref<256x32xbf16, #tpu.memory_space<vmem>>, vector<16x32xbf16>
    %cst_8 = arith.constant dense<0.000000e+00> : vector<16x32xf32>
    %17 = tpu.matmul %15, %16, %cst_8 {dimension_numbers = #tpu.dot_dimension_numbers<[1], [0], [0], [1], [0, 0, 1, 1], [], []>} : vector<16x16xbf16>, vector<16x32xbf16>, vector<16x32xf32> -> vector<16x32xf32>
    %c0_9 = arith.constant 0 : index
    %c0_10 = arith.constant 0 : index
    %18 = vector.load %arg4[%c0_9, %c0_10] : memref<8x128xf32, #tpu.memory_space<vmem>>, vector<1x32xf32>
    %19 = vector.broadcast %18 : vector<1x32xf32> to vector<16x32xf32>
    %20 = arith.addf %17, %19 : vector<16x32xf32>
    %cst_11 = arith.constant 0.000000e+00 : f32
    %21 = vector.broadcast %cst_11 : f32 to vector<16x32xf32>
    %22 = arith.maximumf %20, %21 : vector<16x32xf32>
    %23 = arith.truncf %22 : vector<16x32xf32> to vector<16x32xbf16>
    %c0_12 = arith.constant 0 : index
    %c0_13 = arith.constant 0 : index
    %24 = vector.load %arg3[%c0_12, %c0_13] : memref<64x128xbf16, #tpu.memory_space<vmem>>, vector<32x128xbf16>
    %cst_14 = arith.constant dense<0.000000e+00> : vector<16x128xf32>
    %25 = tpu.matmul %23, %24, %cst_14 {dimension_numbers = #tpu.dot_dimension_numbers<[1], [0], [0], [1], [0, 0, 1, 1], [], []>} : vector<16x32xbf16>, vector<32x128xbf16>, vector<16x128xf32> -> vector<16x128xf32>
    %c1 = arith.constant 1 : index
    %c0_15 = arith.constant 0 : index
    %26 = vector.load %arg4[%c1, %c0_15] : memref<8x128xf32, #tpu.memory_space<vmem>>, vector<1x128xf32>
    %27 = vector.broadcast %26 : vector<1x128xf32> to vector<16x128xf32>
    %28 = arith.addf %25, %27 : vector<16x128xf32>
    %cst_16 = arith.constant 0.000000e+00 : f32
    %29 = vector.broadcast %cst_16 : f32 to vector<16x128xf32>
    %30 = arith.maximumf %28, %29 : vector<16x128xf32>
    %c0_17 = arith.constant 0 : index
    %c0_18 = arith.constant 0 : index
    %31 = vector.load %arg0[%c0_17, %c0_18] : memref<16x64xf32, #tpu.memory_space<vmem>>, vector<16x64xf32>
    %32 = arith.truncf %31 : vector<16x64xf32> to vector<16x64xbf16>
    %c32 = arith.constant 32 : index
    %c0_19 = arith.constant 0 : index
    %33 = vector.load %arg2[%c32, %c0_19] : memref<256x32xbf16, #tpu.memory_space<vmem>>, vector<64x32xbf16>
    %cst_20 = arith.constant dense<0.000000e+00> : vector<16x32xf32>
    %34 = tpu.matmul %32, %33, %cst_20 {dimension_numbers = #tpu.dot_dimension_numbers<[1], [0], [0], [1], [0, 0, 1, 1], [], []>} : vector<16x64xbf16>, vector<64x32xbf16>, vector<16x32xf32> -> vector<16x32xf32>
    %35 = arith.truncf %13 : vector<16x32xf32> to vector<16x32xbf16>
    %c96 = arith.constant 96 : index
    %c0_21 = arith.constant 0 : index
    %36 = vector.load %arg2[%c96, %c0_21] : memref<256x32xbf16, #tpu.memory_space<vmem>>, vector<32x32xbf16>
    %cst_22 = arith.constant dense<0.000000e+00> : vector<16x32xf32>
    %37 = tpu.matmul %35, %36, %cst_22 {dimension_numbers = #tpu.dot_dimension_numbers<[1], [0], [0], [1], [0, 0, 1, 1], [], []>} : vector<16x32xbf16>, vector<32x32xbf16>, vector<16x32xf32> -> vector<16x32xf32>
    %38 = arith.addf %34, %37 : vector<16x32xf32>
    %39 = arith.truncf %30 : vector<16x128xf32> to vector<16x128xbf16>
    %c128 = arith.constant 128 : index
    %c0_23 = arith.constant 0 : index
    %40 = vector.load %arg2[%c128, %c0_23] : memref<256x32xbf16, #tpu.memory_space<vmem>>, vector<128x32xbf16>
    %cst_24 = arith.constant dense<0.000000e+00> : vector<16x32xf32>
    %41 = tpu.matmul %39, %40, %cst_24 {dimension_numbers = #tpu.dot_dimension_numbers<[1], [0], [0], [1], [0, 0, 1, 1], [], []>} : vector<16x128xbf16>, vector<128x32xbf16>, vector<16x32xf32> -> vector<16x32xf32>
    %42 = arith.addf %38, %41 : vector<16x32xf32>
    %c2 = arith.constant 2 : index
    %c0_25 = arith.constant 0 : index
    %43 = vector.load %arg4[%c2, %c0_25] : memref<8x128xf32, #tpu.memory_space<vmem>>, vector<1x32xf32>
    %44 = vector.broadcast %43 : vector<1x32xf32> to vector<16x32xf32>
    %45 = arith.addf %42, %44 : vector<16x32xf32>
    %46 = tpu.iota {dimensions = array<i32: 0>} : vector<16x16xi32>
    %47 = tpu.iota {dimensions = array<i32: 1>} : vector<16x16xi32>
    %c0_i32 = arith.constant 0 : i32
    %48 = vector.broadcast %c0_i32 : i32 to vector<16x16xi32>
    %c0_i32_26 = arith.constant 0 : i32
    %49 = vector.broadcast %c0_i32_26 : i32 to vector<16x16xi32>
    %c8_i32 = arith.constant 8 : i32
    %50 = vector.broadcast %c8_i32 : i32 to vector<16x16xi32>
    %51 = arith.cmpi sge, %46, %50 : vector<16x16xi32>
    %52 = arith.extui %51 : vector<16x16xi1> to vector<16x16xi32>
    %53 = arith.addi %48, %52 : vector<16x16xi32>
    %c8_i32_27 = arith.constant 8 : i32
    %54 = vector.broadcast %c8_i32_27 : i32 to vector<16x16xi32>
    %55 = arith.cmpi sge, %47, %54 : vector<16x16xi32>
    %56 = arith.extui %55 : vector<16x16xi1> to vector<16x16xi32>
    %57 = arith.addi %49, %56 : vector<16x16xi32>
    %c13_i32 = arith.constant 13 : i32
    %58 = vector.broadcast %c13_i32 : i32 to vector<16x16xi32>
    %59 = arith.cmpi sge, %46, %58 : vector<16x16xi32>
    %60 = arith.extui %59 : vector<16x16xi1> to vector<16x16xi32>
    %61 = arith.addi %53, %60 : vector<16x16xi32>
    %c13_i32_28 = arith.constant 13 : i32
    %62 = vector.broadcast %c13_i32_28 : i32 to vector<16x16xi32>
    %63 = arith.cmpi sge, %47, %62 : vector<16x16xi32>
    %64 = arith.extui %63 : vector<16x16xi1> to vector<16x16xi32>
    %65 = arith.addi %57, %64 : vector<16x16xi32>
    %66 = arith.cmpi eq, %61, %65 : vector<16x16xi32>
    %cst_29 = arith.constant 0.000000e+00 : f32
    %cst_30 = arith.constant -1.000000e+30 : f32
    %67 = vector.broadcast %cst_29 : f32 to vector<16x16xf32>
    %68 = vector.broadcast %cst_30 : f32 to vector<16x16xf32>
    %69 = arith.select %66, %67, %68 : vector<16x16xi1>, vector<16x16xf32>
    %c0_31 = arith.constant 0 : index
    %c0_32 = arith.constant 0 : index
    %c0_33 = arith.constant 0 : index
    %70 = vector.load %arg8[%c0_31, %c0_32, %c0_33] : memref<2x8x128xf32, #tpu.memory_space<vmem>>, vector<1x8x128xf32>
    %71 = vector.shape_cast %70 : vector<1x8x128xf32> to vector<8x128xf32>
    %72 = vector.extract_strided_slice %71 {offsets = [0, 0], sizes = [1, 96], strides = [1, 1]} : vector<8x128xf32> to vector<1x96xf32>
    %73 = vector.extract_strided_slice %71 {offsets = [1, 0], sizes = [1, 32], strides = [1, 1]} : vector<8x128xf32> to vector<1x32xf32>
    %74 = vector.extract_strided_slice %71 {offsets = [2, 0], sizes = [1, 32], strides = [1, 1]} : vector<8x128xf32> to vector<1x32xf32>
    %75 = vector.extract_strided_slice %71 {offsets = [3, 0], sizes = [1, 32], strides = [1, 1]} : vector<8x128xf32> to vector<1x32xf32>
    %76 = vector.extract_strided_slice %71 {offsets = [4, 0], sizes = [1, 64], strides = [1, 1]} : vector<8x128xf32> to vector<1x64xf32>
    %77 = vector.extract_strided_slice %71 {offsets = [5, 0], sizes = [1, 32], strides = [1, 1]} : vector<8x128xf32> to vector<1x32xf32>
    %78 = vector.extract_strided_slice %71 {offsets = [6, 0], sizes = [1, 32], strides = [1, 1]} : vector<8x128xf32> to vector<1x32xf32>
    %79 = vector.extract_strided_slice %71 {offsets = [7, 0], sizes = [1, 32], strides = [1, 1]} : vector<8x128xf32> to vector<1x32xf32>
    %80 = arith.truncf %45 : vector<16x32xf32> to vector<16x32xbf16>
    %c0_34 = arith.constant 0 : index
    %c0_35 = arith.constant 0 : index
    %c0_36 = arith.constant 0 : index
    %81 = vector.load %arg5[%c0_34, %c0_35, %c0_36] : memref<2x32x96xbf16, #tpu.memory_space<vmem>>, vector<1x32x96xbf16>
    %82 = vector.shape_cast %81 : vector<1x32x96xbf16> to vector<32x96xbf16>
    %cst_37 = arith.constant dense<0.000000e+00> : vector<16x96xf32>
    %83 = tpu.matmul %80, %82, %cst_37 {dimension_numbers = #tpu.dot_dimension_numbers<[1], [0], [0], [1], [0, 0, 1, 1], [], []>} : vector<16x32xbf16>, vector<32x96xbf16>, vector<16x96xf32> -> vector<16x96xf32>
    %84 = vector.broadcast %72 : vector<1x96xf32> to vector<16x96xf32>
    %85 = arith.addf %83, %84 : vector<16x96xf32>
    %86 = vector.extract_strided_slice %85 {offsets = [0, 0], sizes = [16, 16], strides = [1, 1]} : vector<16x96xf32> to vector<16x16xf32>
    %87 = vector.extract_strided_slice %85 {offsets = [0, 32], sizes = [16, 16], strides = [1, 1]} : vector<16x96xf32> to vector<16x16xf32>
    %88 = vector.extract_strided_slice %85 {offsets = [0, 64], sizes = [16, 16], strides = [1, 1]} : vector<16x96xf32> to vector<16x16xf32>
    "tpu.trace_start"() <{level = 10 : i32, message = "qd,kd->qk"}> : () -> ()
    %cst_38 = arith.constant dense<0.000000e+00> : vector<16x16xf32>
    %89 = tpu.matmul %86, %87, %cst_38 {dimension_numbers = #tpu.dot_dimension_numbers<[1], [1], [0], [0], [0, 0, 1, 0], [], []>} : vector<16x16xf32>, vector<16x16xf32>, vector<16x16xf32> -> vector<16x16xf32>
    "tpu.trace_stop"() : () -> ()
    %cst_39 = arith.constant 2.500000e-01 : f32
    %90 = vector.broadcast %cst_39 : f32 to vector<16x16xf32>
    %91 = arith.mulf %89, %90 : vector<16x16xf32>
    %92 = arith.addf %91, %69 : vector<16x16xf32>
    %cst_40 = arith.constant dense<0xFF800000> : vector<16xf32>
    %93 = vector.multi_reduction <maximumf>, %92, %cst_40 [1] : vector<16x16xf32> to vector<16xf32>
    %94 = vector.shape_cast %93 : vector<16xf32> to vector<16x1xf32>
    %95 = vector.broadcast %94 : vector<16x1xf32> to vector<16x16xf32>
    %96 = arith.subf %92, %95 : vector<16x16xf32>
    %97 = math.exp %96 : vector<16x16xf32>
    %cst_41 = arith.constant dense<0.000000e+00> : vector<16xf32>
    %98 = vector.multi_reduction <add>, %97, %cst_41 [1] : vector<16x16xf32> to vector<16xf32>
    %99 = vector.shape_cast %98 : vector<16xf32> to vector<16x1xf32>
    %100 = tpu.reciprocal %99 {approx = true} : vector<16x1xf32> -> vector<16x1xf32>
    %101 = vector.broadcast %100 : vector<16x1xf32> to vector<16x16xf32>
    %102 = arith.mulf %97, %101 : vector<16x16xf32>
    %cst_42 = arith.constant dense<0.000000e+00> : vector<16x16xf32>
    %103 = tpu.matmul %102, %88, %cst_42 {dimension_numbers = #tpu.dot_dimension_numbers<[1], [0], [0], [1], [0, 0, 1, 1], [], []>} : vector<16x16xf32>, vector<16x16xf32>, vector<16x16xf32> -> vector<16x16xf32>
    %104 = vector.extract_strided_slice %85 {offsets = [0, 16], sizes = [16, 16], strides = [1, 1]} : vector<16x96xf32> to vector<16x16xf32>
    %105 = vector.extract_strided_slice %85 {offsets = [0, 48], sizes = [16, 16], strides = [1, 1]} : vector<16x96xf32> to vector<16x16xf32>
    %106 = vector.extract_strided_slice %85 {offsets = [0, 80], sizes = [16, 16], strides = [1, 1]} : vector<16x96xf32> to vector<16x16xf32>
    "tpu.trace_start"() <{level = 10 : i32, message = "qd,kd->qk"}> : () -> ()
    %cst_43 = arith.constant dense<0.000000e+00> : vector<16x16xf32>
    %107 = tpu.matmul %104, %105, %cst_43 {dimension_numbers = #tpu.dot_dimension_numbers<[1], [1], [0], [0], [0, 0, 1, 0], [], []>} : vector<16x16xf32>, vector<16x16xf32>, vector<16x16xf32> -> vector<16x16xf32>
    "tpu.trace_stop"() : () -> ()
    %cst_44 = arith.constant 2.500000e-01 : f32
    %108 = vector.broadcast %cst_44 : f32 to vector<16x16xf32>
    %109 = arith.mulf %107, %108 : vector<16x16xf32>
    %110 = arith.addf %109, %69 : vector<16x16xf32>
    %cst_45 = arith.constant dense<0xFF800000> : vector<16xf32>
    %111 = vector.multi_reduction <maximumf>, %110, %cst_45 [1] : vector<16x16xf32> to vector<16xf32>
    %112 = vector.shape_cast %111 : vector<16xf32> to vector<16x1xf32>
    %113 = vector.broadcast %112 : vector<16x1xf32> to vector<16x16xf32>
    %114 = arith.subf %110, %113 : vector<16x16xf32>
    %115 = math.exp %114 : vector<16x16xf32>
    %cst_46 = arith.constant dense<0.000000e+00> : vector<16xf32>
    %116 = vector.multi_reduction <add>, %115, %cst_46 [1] : vector<16x16xf32> to vector<16xf32>
    %117 = vector.shape_cast %116 : vector<16xf32> to vector<16x1xf32>
    %118 = tpu.reciprocal %117 {approx = true} : vector<16x1xf32> -> vector<16x1xf32>
    %119 = vector.broadcast %118 : vector<16x1xf32> to vector<16x16xf32>
    %120 = arith.mulf %115, %119 : vector<16x16xf32>
    %cst_47 = arith.constant dense<0.000000e+00> : vector<16x16xf32>
    %121 = tpu.matmul %120, %106, %cst_47 {dimension_numbers = #tpu.dot_dimension_numbers<[1], [0], [0], [1], [0, 0, 1, 1], [], []>} : vector<16x16xf32>, vector<16x16xf32>, vector<16x16xf32> -> vector<16x16xf32>
    %122 = tpu.concatenate %103, %121 in 1 : vector<16x16xf32>, vector<16x16xf32> -> vector<16x32xf32>
    %c0_48 = arith.constant 0 : index
    %c0_49 = arith.constant 0 : index
    %c0_50 = arith.constant 0 : index
    %123 = vector.load %arg6[%c0_48, %c0_49, %c0_50] : memref<2x32x96xbf16, #tpu.memory_space<vmem>>, vector<1x32x96xbf16>
    %124 = vector.shape_cast %123 : vector<1x32x96xbf16> to vector<32x96xbf16>
    %125 = arith.truncf %122 : vector<16x32xf32> to vector<16x32xbf16>
    %126 = vector.extract_strided_slice %124 {offsets = [0, 0], sizes = [32, 32], strides = [1, 1]} : vector<32x96xbf16> to vector<32x32xbf16>
    %cst_51 = arith.constant dense<0.000000e+00> : vector<16x32xf32>
    %127 = tpu.matmul %125, %126, %cst_51 {dimension_numbers = #tpu.dot_dimension_numbers<[1], [0], [0], [1], [0, 0, 1, 1], [], []>} : vector<16x32xbf16>, vector<32x32xbf16>, vector<16x32xf32> -> vector<16x32xf32>
    %128 = vector.broadcast %73 : vector<1x32xf32> to vector<16x32xf32>
    %129 = arith.addf %127, %128 : vector<16x32xf32>
    %130 = arith.addf %129, %45 : vector<16x32xf32>
    %cst_52 = arith.constant dense<0.000000e+00> : vector<16xf32>
    %131 = vector.multi_reduction <add>, %130, %cst_52 [1] : vector<16x32xf32> to vector<16xf32>
    %132 = vector.shape_cast %131 : vector<16xf32> to vector<16x1xf32>
    %cst_53 = arith.constant 3.200000e+01 : f32
    %133 = vector.broadcast %cst_53 : f32 to vector<16x1xf32>
    %134 = arith.divf %132, %133 : vector<16x1xf32>
    %135 = vector.broadcast %134 : vector<16x1xf32> to vector<16x32xf32>
    %136 = arith.subf %130, %135 : vector<16x32xf32>
    %137 = arith.mulf %136, %136 : vector<16x32xf32>
    %cst_54 = arith.constant dense<0.000000e+00> : vector<16xf32>
    %138 = vector.multi_reduction <add>, %137, %cst_54 [1] : vector<16x32xf32> to vector<16xf32>
    %139 = vector.shape_cast %138 : vector<16xf32> to vector<16x1xf32>
    %cst_55 = arith.constant 3.200000e+01 : f32
    %140 = vector.broadcast %cst_55 : f32 to vector<16x1xf32>
    %141 = arith.divf %139, %140 : vector<16x1xf32>
    %142 = vector.broadcast %134 : vector<16x1xf32> to vector<16x32xf32>
    %143 = arith.subf %130, %142 : vector<16x32xf32>
    %cst_56 = arith.constant 9.99999974E-6 : f32
    %144 = vector.broadcast %cst_56 : f32 to vector<16x1xf32>
    %145 = arith.addf %141, %144 : vector<16x1xf32>
    %146 = math.rsqrt %145 : vector<16x1xf32>
    %147 = vector.broadcast %146 : vector<16x1xf32> to vector<16x32xf32>
    %148 = arith.mulf %143, %147 : vector<16x32xf32>
    %149 = vector.broadcast %74 : vector<1x32xf32> to vector<16x32xf32>
    %150 = arith.mulf %148, %149 : vector<16x32xf32>
    %151 = vector.broadcast %75 : vector<1x32xf32> to vector<16x32xf32>
    %152 = arith.addf %150, %151 : vector<16x32xf32>
    %153 = arith.truncf %152 : vector<16x32xf32> to vector<16x32xbf16>
    %154 = vector.extract_strided_slice %124 {offsets = [0, 32], sizes = [32, 64], strides = [1, 1]} : vector<32x96xbf16> to vector<32x64xbf16>
    %cst_57 = arith.constant dense<0.000000e+00> : vector<16x64xf32>
    %155 = tpu.matmul %153, %154, %cst_57 {dimension_numbers = #tpu.dot_dimension_numbers<[1], [0], [0], [1], [0, 0, 1, 1], [], []>} : vector<16x32xbf16>, vector<32x64xbf16>, vector<16x64xf32> -> vector<16x64xf32>
    %156 = vector.broadcast %76 : vector<1x64xf32> to vector<16x64xf32>
    %157 = arith.addf %155, %156 : vector<16x64xf32>
    %cst_58 = arith.constant 0.000000e+00 : f32
    %158 = vector.broadcast %cst_58 : f32 to vector<16x64xf32>
    %159 = arith.maximumf %157, %158 : vector<16x64xf32>
    %160 = arith.truncf %159 : vector<16x64xf32> to vector<16x64xbf16>
    %c0_59 = arith.constant 0 : index
    %c0_60 = arith.constant 0 : index
    %c0_61 = arith.constant 0 : index
    %161 = vector.load %arg7[%c0_59, %c0_60, %c0_61] : memref<2x64x32xbf16, #tpu.memory_space<vmem>>, vector<1x64x32xbf16>
    %162 = vector.shape_cast %161 : vector<1x64x32xbf16> to vector<64x32xbf16>
    %cst_62 = arith.constant dense<0.000000e+00> : vector<16x32xf32>
    %163 = tpu.matmul %160, %162, %cst_62 {dimension_numbers = #tpu.dot_dimension_numbers<[1], [0], [0], [1], [0, 0, 1, 1], [], []>} : vector<16x64xbf16>, vector<64x32xbf16>, vector<16x32xf32> -> vector<16x32xf32>
    %164 = vector.broadcast %77 : vector<1x32xf32> to vector<16x32xf32>
    %165 = arith.addf %163, %164 : vector<16x32xf32>
    %166 = arith.addf %165, %152 : vector<16x32xf32>
    %cst_63 = arith.constant dense<0.000000e+00> : vector<16xf32>
    %167 = vector.multi_reduction <add>, %166, %cst_63 [1] : vector<16x32xf32> to vector<16xf32>
    %168 = vector.shape_cast %167 : vector<16xf32> to vector<16x1xf32>
    %cst_64 = arith.constant 3.200000e+01 : f32
    %169 = vector.broadcast %cst_64 : f32 to vector<16x1xf32>
    %170 = arith.divf %168, %169 : vector<16x1xf32>
    %171 = vector.broadcast %170 : vector<16x1xf32> to vector<16x32xf32>
    %172 = arith.subf %166, %171 : vector<16x32xf32>
    %173 = arith.mulf %172, %172 : vector<16x32xf32>
    %cst_65 = arith.constant dense<0.000000e+00> : vector<16xf32>
    %174 = vector.multi_reduction <add>, %173, %cst_65 [1] : vector<16x32xf32> to vector<16xf32>
    %175 = vector.shape_cast %174 : vector<16xf32> to vector<16x1xf32>
    %cst_66 = arith.constant 3.200000e+01 : f32
    %176 = vector.broadcast %cst_66 : f32 to vector<16x1xf32>
    %177 = arith.divf %175, %176 : vector<16x1xf32>
    %178 = vector.broadcast %170 : vector<16x1xf32> to vector<16x32xf32>
    %179 = arith.subf %166, %178 : vector<16x32xf32>
    %cst_67 = arith.constant 9.99999974E-6 : f32
    %180 = vector.broadcast %cst_67 : f32 to vector<16x1xf32>
    %181 = arith.addf %177, %180 : vector<16x1xf32>
    %182 = math.rsqrt %181 : vector<16x1xf32>
    %183 = vector.broadcast %182 : vector<16x1xf32> to vector<16x32xf32>
    %184 = arith.mulf %179, %183 : vector<16x32xf32>
    %185 = vector.broadcast %78 : vector<1x32xf32> to vector<16x32xf32>
    %186 = arith.mulf %184, %185 : vector<16x32xf32>
    %187 = vector.broadcast %79 : vector<1x32xf32> to vector<16x32xf32>
    %188 = arith.addf %186, %187 : vector<16x32xf32>
    %c1_68 = arith.constant 1 : index
    %c0_69 = arith.constant 0 : index
    %c0_70 = arith.constant 0 : index
    %189 = vector.load %arg8[%c1_68, %c0_69, %c0_70] : memref<2x8x128xf32, #tpu.memory_space<vmem>>, vector<1x8x128xf32>
    %190 = vector.shape_cast %189 : vector<1x8x128xf32> to vector<8x128xf32>
    %191 = vector.extract_strided_slice %190 {offsets = [0, 0], sizes = [1, 96], strides = [1, 1]} : vector<8x128xf32> to vector<1x96xf32>
    %192 = vector.extract_strided_slice %190 {offsets = [1, 0], sizes = [1, 32], strides = [1, 1]} : vector<8x128xf32> to vector<1x32xf32>
    %193 = vector.extract_strided_slice %190 {offsets = [2, 0], sizes = [1, 32], strides = [1, 1]} : vector<8x128xf32> to vector<1x32xf32>
    %194 = vector.extract_strided_slice %190 {offsets = [3, 0], sizes = [1, 32], strides = [1, 1]} : vector<8x128xf32> to vector<1x32xf32>
    %195 = vector.extract_strided_slice %190 {offsets = [4, 0], sizes = [1, 64], strides = [1, 1]} : vector<8x128xf32> to vector<1x64xf32>
    %196 = vector.extract_strided_slice %190 {offsets = [5, 0], sizes = [1, 32], strides = [1, 1]} : vector<8x128xf32> to vector<1x32xf32>
    %197 = vector.extract_strided_slice %190 {offsets = [6, 0], sizes = [1, 32], strides = [1, 1]} : vector<8x128xf32> to vector<1x32xf32>
    %198 = vector.extract_strided_slice %190 {offsets = [7, 0], sizes = [1, 32], strides = [1, 1]} : vector<8x128xf32> to vector<1x32xf32>
    %199 = arith.truncf %188 : vector<16x32xf32> to vector<16x32xbf16>
    %c1_71 = arith.constant 1 : index
    %c0_72 = arith.constant 0 : index
    %c0_73 = arith.constant 0 : index
    %200 = vector.load %arg5[%c1_71, %c0_72, %c0_73] : memref<2x32x96xbf16, #tpu.memory_space<vmem>>, vector<1x32x96xbf16>
    %201 = vector.shape_cast %200 : vector<1x32x96xbf16> to vector<32x96xbf16>
    %cst_74 = arith.constant dense<0.000000e+00> : vector<16x96xf32>
    %202 = tpu.matmul %199, %201, %cst_74 {dimension_numbers = #tpu.dot_dimension_numbers<[1], [0], [0], [1], [0, 0, 1, 1], [], []>} : vector<16x32xbf16>, vector<32x96xbf16>, vector<16x96xf32> -> vector<16x96xf32>
    %203 = vector.broadcast %191 : vector<1x96xf32> to vector<16x96xf32>
    %204 = arith.addf %202, %203 : vector<16x96xf32>
    %205 = vector.extract_strided_slice %204 {offsets = [0, 0], sizes = [16, 16], strides = [1, 1]} : vector<16x96xf32> to vector<16x16xf32>
    %206 = vector.extract_strided_slice %204 {offsets = [0, 32], sizes = [16, 16], strides = [1, 1]} : vector<16x96xf32> to vector<16x16xf32>
    %207 = vector.extract_strided_slice %204 {offsets = [0, 64], sizes = [16, 16], strides = [1, 1]} : vector<16x96xf32> to vector<16x16xf32>
    "tpu.trace_start"() <{level = 10 : i32, message = "qd,kd->qk"}> : () -> ()
    %cst_75 = arith.constant dense<0.000000e+00> : vector<16x16xf32>
    %208 = tpu.matmul %205, %206, %cst_75 {dimension_numbers = #tpu.dot_dimension_numbers<[1], [1], [0], [0], [0, 0, 1, 0], [], []>} : vector<16x16xf32>, vector<16x16xf32>, vector<16x16xf32> -> vector<16x16xf32>
    "tpu.trace_stop"() : () -> ()
    %cst_76 = arith.constant 2.500000e-01 : f32
    %209 = vector.broadcast %cst_76 : f32 to vector<16x16xf32>
    %210 = arith.mulf %208, %209 : vector<16x16xf32>
    %211 = arith.addf %210, %69 : vector<16x16xf32>
    %cst_77 = arith.constant dense<0xFF800000> : vector<16xf32>
    %212 = vector.multi_reduction <maximumf>, %211, %cst_77 [1] : vector<16x16xf32> to vector<16xf32>
    %213 = vector.shape_cast %212 : vector<16xf32> to vector<16x1xf32>
    %214 = vector.broadcast %213 : vector<16x1xf32> to vector<16x16xf32>
    %215 = arith.subf %211, %214 : vector<16x16xf32>
    %216 = math.exp %215 : vector<16x16xf32>
    %cst_78 = arith.constant dense<0.000000e+00> : vector<16xf32>
    %217 = vector.multi_reduction <add>, %216, %cst_78 [1] : vector<16x16xf32> to vector<16xf32>
    %218 = vector.shape_cast %217 : vector<16xf32> to vector<16x1xf32>
    %219 = tpu.reciprocal %218 {approx = true} : vector<16x1xf32> -> vector<16x1xf32>
    %220 = vector.broadcast %219 : vector<16x1xf32> to vector<16x16xf32>
    %221 = arith.mulf %216, %220 : vector<16x16xf32>
    %cst_79 = arith.constant dense<0.000000e+00> : vector<16x16xf32>
    %222 = tpu.matmul %221, %207, %cst_79 {dimension_numbers = #tpu.dot_dimension_numbers<[1], [0], [0], [1], [0, 0, 1, 1], [], []>} : vector<16x16xf32>, vector<16x16xf32>, vector<16x16xf32> -> vector<16x16xf32>
    %223 = vector.extract_strided_slice %204 {offsets = [0, 16], sizes = [16, 16], strides = [1, 1]} : vector<16x96xf32> to vector<16x16xf32>
    %224 = vector.extract_strided_slice %204 {offsets = [0, 48], sizes = [16, 16], strides = [1, 1]} : vector<16x96xf32> to vector<16x16xf32>
    %225 = vector.extract_strided_slice %204 {offsets = [0, 80], sizes = [16, 16], strides = [1, 1]} : vector<16x96xf32> to vector<16x16xf32>
    "tpu.trace_start"() <{level = 10 : i32, message = "qd,kd->qk"}> : () -> ()
    %cst_80 = arith.constant dense<0.000000e+00> : vector<16x16xf32>
    %226 = tpu.matmul %223, %224, %cst_80 {dimension_numbers = #tpu.dot_dimension_numbers<[1], [1], [0], [0], [0, 0, 1, 0], [], []>} : vector<16x16xf32>, vector<16x16xf32>, vector<16x16xf32> -> vector<16x16xf32>
    "tpu.trace_stop"() : () -> ()
    %cst_81 = arith.constant 2.500000e-01 : f32
    %227 = vector.broadcast %cst_81 : f32 to vector<16x16xf32>
    %228 = arith.mulf %226, %227 : vector<16x16xf32>
    %229 = arith.addf %228, %69 : vector<16x16xf32>
    %cst_82 = arith.constant dense<0xFF800000> : vector<16xf32>
    %230 = vector.multi_reduction <maximumf>, %229, %cst_82 [1] : vector<16x16xf32> to vector<16xf32>
    %231 = vector.shape_cast %230 : vector<16xf32> to vector<16x1xf32>
    %232 = vector.broadcast %231 : vector<16x1xf32> to vector<16x16xf32>
    %233 = arith.subf %229, %232 : vector<16x16xf32>
    %234 = math.exp %233 : vector<16x16xf32>
    %cst_83 = arith.constant dense<0.000000e+00> : vector<16xf32>
    %235 = vector.multi_reduction <add>, %234, %cst_83 [1] : vector<16x16xf32> to vector<16xf32>
    %236 = vector.shape_cast %235 : vector<16xf32> to vector<16x1xf32>
    %237 = tpu.reciprocal %236 {approx = true} : vector<16x1xf32> -> vector<16x1xf32>
    %238 = vector.broadcast %237 : vector<16x1xf32> to vector<16x16xf32>
    %239 = arith.mulf %234, %238 : vector<16x16xf32>
    %cst_84 = arith.constant dense<0.000000e+00> : vector<16x16xf32>
    %240 = tpu.matmul %239, %225, %cst_84 {dimension_numbers = #tpu.dot_dimension_numbers<[1], [0], [0], [1], [0, 0, 1, 1], [], []>} : vector<16x16xf32>, vector<16x16xf32>, vector<16x16xf32> -> vector<16x16xf32>
    %241 = tpu.concatenate %222, %240 in 1 : vector<16x16xf32>, vector<16x16xf32> -> vector<16x32xf32>
    %c1_85 = arith.constant 1 : index
    %c0_86 = arith.constant 0 : index
    %c0_87 = arith.constant 0 : index
    %242 = vector.load %arg6[%c1_85, %c0_86, %c0_87] : memref<2x32x96xbf16, #tpu.memory_space<vmem>>, vector<1x32x96xbf16>
    %243 = vector.shape_cast %242 : vector<1x32x96xbf16> to vector<32x96xbf16>
    %244 = arith.truncf %241 : vector<16x32xf32> to vector<16x32xbf16>
    %245 = vector.extract_strided_slice %243 {offsets = [0, 0], sizes = [32, 32], strides = [1, 1]} : vector<32x96xbf16> to vector<32x32xbf16>
    %cst_88 = arith.constant dense<0.000000e+00> : vector<16x32xf32>
    %246 = tpu.matmul %244, %245, %cst_88 {dimension_numbers = #tpu.dot_dimension_numbers<[1], [0], [0], [1], [0, 0, 1, 1], [], []>} : vector<16x32xbf16>, vector<32x32xbf16>, vector<16x32xf32> -> vector<16x32xf32>
    %247 = vector.broadcast %192 : vector<1x32xf32> to vector<16x32xf32>
    %248 = arith.addf %246, %247 : vector<16x32xf32>
    %249 = arith.addf %248, %188 : vector<16x32xf32>
    %cst_89 = arith.constant dense<0.000000e+00> : vector<16xf32>
    %250 = vector.multi_reduction <add>, %249, %cst_89 [1] : vector<16x32xf32> to vector<16xf32>
    %251 = vector.shape_cast %250 : vector<16xf32> to vector<16x1xf32>
    %cst_90 = arith.constant 3.200000e+01 : f32
    %252 = vector.broadcast %cst_90 : f32 to vector<16x1xf32>
    %253 = arith.divf %251, %252 : vector<16x1xf32>
    %254 = vector.broadcast %253 : vector<16x1xf32> to vector<16x32xf32>
    %255 = arith.subf %249, %254 : vector<16x32xf32>
    %256 = arith.mulf %255, %255 : vector<16x32xf32>
    %cst_91 = arith.constant dense<0.000000e+00> : vector<16xf32>
    %257 = vector.multi_reduction <add>, %256, %cst_91 [1] : vector<16x32xf32> to vector<16xf32>
    %258 = vector.shape_cast %257 : vector<16xf32> to vector<16x1xf32>
    %cst_92 = arith.constant 3.200000e+01 : f32
    %259 = vector.broadcast %cst_92 : f32 to vector<16x1xf32>
    %260 = arith.divf %258, %259 : vector<16x1xf32>
    %261 = vector.broadcast %253 : vector<16x1xf32> to vector<16x32xf32>
    %262 = arith.subf %249, %261 : vector<16x32xf32>
    %cst_93 = arith.constant 9.99999974E-6 : f32
    %263 = vector.broadcast %cst_93 : f32 to vector<16x1xf32>
    %264 = arith.addf %260, %263 : vector<16x1xf32>
    %265 = math.rsqrt %264 : vector<16x1xf32>
    %266 = vector.broadcast %265 : vector<16x1xf32> to vector<16x32xf32>
    %267 = arith.mulf %262, %266 : vector<16x32xf32>
    %268 = vector.broadcast %193 : vector<1x32xf32> to vector<16x32xf32>
    %269 = arith.mulf %267, %268 : vector<16x32xf32>
    %270 = vector.broadcast %194 : vector<1x32xf32> to vector<16x32xf32>
    %271 = arith.addf %269, %270 : vector<16x32xf32>
    %272 = arith.truncf %271 : vector<16x32xf32> to vector<16x32xbf16>
    %273 = vector.extract_strided_slice %243 {offsets = [0, 32], sizes = [32, 64], strides = [1, 1]} : vector<32x96xbf16> to vector<32x64xbf16>
    %cst_94 = arith.constant dense<0.000000e+00> : vector<16x64xf32>
    %274 = tpu.matmul %272, %273, %cst_94 {dimension_numbers = #tpu.dot_dimension_numbers<[1], [0], [0], [1], [0, 0, 1, 1], [], []>} : vector<16x32xbf16>, vector<32x64xbf16>, vector<16x64xf32> -> vector<16x64xf32>
    %275 = vector.broadcast %195 : vector<1x64xf32> to vector<16x64xf32>
    %276 = arith.addf %274, %275 : vector<16x64xf32>
    %cst_95 = arith.constant 0.000000e+00 : f32
    %277 = vector.broadcast %cst_95 : f32 to vector<16x64xf32>
    %278 = arith.maximumf %276, %277 : vector<16x64xf32>
    %279 = arith.truncf %278 : vector<16x64xf32> to vector<16x64xbf16>
    %c1_96 = arith.constant 1 : index
    %c0_97 = arith.constant 0 : index
    %c0_98 = arith.constant 0 : index
    %280 = vector.load %arg7[%c1_96, %c0_97, %c0_98] : memref<2x64x32xbf16, #tpu.memory_space<vmem>>, vector<1x64x32xbf16>
    %281 = vector.shape_cast %280 : vector<1x64x32xbf16> to vector<64x32xbf16>
    %cst_99 = arith.constant dense<0.000000e+00> : vector<16x32xf32>
    %282 = tpu.matmul %279, %281, %cst_99 {dimension_numbers = #tpu.dot_dimension_numbers<[1], [0], [0], [1], [0, 0, 1, 1], [], []>} : vector<16x64xbf16>, vector<64x32xbf16>, vector<16x32xf32> -> vector<16x32xf32>
    %283 = vector.broadcast %196 : vector<1x32xf32> to vector<16x32xf32>
    %284 = arith.addf %282, %283 : vector<16x32xf32>
    %285 = arith.addf %284, %271 : vector<16x32xf32>
    %cst_100 = arith.constant dense<0.000000e+00> : vector<16xf32>
    %286 = vector.multi_reduction <add>, %285, %cst_100 [1] : vector<16x32xf32> to vector<16xf32>
    %287 = vector.shape_cast %286 : vector<16xf32> to vector<16x1xf32>
    %cst_101 = arith.constant 3.200000e+01 : f32
    %288 = vector.broadcast %cst_101 : f32 to vector<16x1xf32>
    %289 = arith.divf %287, %288 : vector<16x1xf32>
    %290 = vector.broadcast %289 : vector<16x1xf32> to vector<16x32xf32>
    %291 = arith.subf %285, %290 : vector<16x32xf32>
    %292 = arith.mulf %291, %291 : vector<16x32xf32>
    %cst_102 = arith.constant dense<0.000000e+00> : vector<16xf32>
    %293 = vector.multi_reduction <add>, %292, %cst_102 [1] : vector<16x32xf32> to vector<16xf32>
    %294 = vector.shape_cast %293 : vector<16xf32> to vector<16x1xf32>
    %cst_103 = arith.constant 3.200000e+01 : f32
    %295 = vector.broadcast %cst_103 : f32 to vector<16x1xf32>
    %296 = arith.divf %294, %295 : vector<16x1xf32>
    %297 = vector.broadcast %289 : vector<16x1xf32> to vector<16x32xf32>
    %298 = arith.subf %285, %297 : vector<16x32xf32>
    %cst_104 = arith.constant 9.99999974E-6 : f32
    %299 = vector.broadcast %cst_104 : f32 to vector<16x1xf32>
    %300 = arith.addf %296, %299 : vector<16x1xf32>
    %301 = math.rsqrt %300 : vector<16x1xf32>
    %302 = vector.broadcast %301 : vector<16x1xf32> to vector<16x32xf32>
    %303 = arith.mulf %298, %302 : vector<16x32xf32>
    %304 = vector.broadcast %197 : vector<1x32xf32> to vector<16x32xf32>
    %305 = arith.mulf %303, %304 : vector<16x32xf32>
    %306 = vector.broadcast %198 : vector<1x32xf32> to vector<16x32xf32>
    %307 = arith.addf %305, %306 : vector<16x32xf32>
    %308 = arith.truncf %307 : vector<16x32xf32> to vector<16x32xbf16>
    %c32_105 = arith.constant 32 : index
    %c0_106 = arith.constant 0 : index
    %309 = vector.load %arg3[%c32_105, %c0_106] : memref<64x128xbf16, #tpu.memory_space<vmem>>, vector<32x128xbf16>
    %cst_107 = arith.constant dense<0.000000e+00> : vector<16x128xf32>
    %310 = tpu.matmul %308, %309, %cst_107 {dimension_numbers = #tpu.dot_dimension_numbers<[1], [0], [0], [1], [0, 0, 1, 1], [], []>} : vector<16x32xbf16>, vector<32x128xbf16>, vector<16x128xf32> -> vector<16x128xf32>
    %c3 = arith.constant 3 : index
    %c0_108 = arith.constant 0 : index
    %311 = vector.load %arg4[%c3, %c0_108] : memref<8x128xf32, #tpu.memory_space<vmem>>, vector<1x128xf32>
    %312 = vector.broadcast %311 : vector<1x128xf32> to vector<16x128xf32>
    %313 = arith.addf %310, %312 : vector<16x128xf32>
    %cst_109 = arith.constant 0.000000e+00 : f32
    %314 = vector.broadcast %cst_109 : f32 to vector<16x96xf32>
    %315 = tpu.concatenate %307, %314 in 1 : vector<16x32xf32>, vector<16x96xf32> -> vector<16x128xf32>
    %316 = tpu.concatenate %30, %315, %313 in 1 : vector<16x128xf32>, vector<16x128xf32>, vector<16x128xf32> -> vector<16x384xf32>
    %c0_110 = arith.constant 0 : index
    %c0_111 = arith.constant 0 : index
    %317 = vector.load %arg9[%c0_110, %c0_111] : memref<16x384xf32, #tpu.memory_space<vmem>>, vector<16x384xf32>
    tpu.vector_store %arg9[%c0_110, %c0_111], %316 {strides = array<i32>} : memref<16x384xf32, #tpu.memory_space<vmem>>, vector<16x384xf32>,
    return
  }
}

</mosaic_0001>

<llo_original>
// kernel: transformer_obj_context_forward.1
$region0: #{transformer_obj_context_forward.1}
  #allocation0 [shape = 'u32[]', space=smem, size = 0x4, offset = 0x4, fixed_abs, tag = 'smem constant byte address 0x4 - core index']
  #allocation1 [shape = 'u32[144,128]{1,0:T(1,128)}', space=vmem, size = 0x12000, scoped, tag = 'internal scratch']
  %s0 = inlined_call_operand.vmem [shape: f32[16,64], index: 0, kind: input, shape index: {}]
  %s1 = inlined_call_operand.vmem [shape: f32[16,32], index: 1, kind: input, shape index: {}]
  %s2 = inlined_call_operand.vmem [shape: bf16[256,32], index: 2, kind: input, shape index: {}]
  %s3 = inlined_call_operand.vmem [shape: bf16[64,128], index: 3, kind: input, shape index: {}]
  %s4 = inlined_call_operand.vmem [shape: f32[8,128], index: 4, kind: input, shape index: {}]
  %s5 = inlined_call_operand.vmem [shape: bf16[2,32,96], index: 5, kind: input, shape index: {}]
  %s6 = inlined_call_operand.vmem [shape: bf16[2,32,96], index: 6, kind: input, shape index: {}]
  %s7 = inlined_call_operand.vmem [shape: bf16[2,64,32], index: 7, kind: input, shape index: {}]
  %s8 = inlined_call_operand.vmem [shape: f32[2,8,128], index: 8, kind: input, shape index: {}]
  %s9 = inlined_call_operand.vmem [shape: f32[16,384], index: 9, kind: output, shape index: {}]
  %s10 = sld [smem:[#allocation0]]
  $region46: #{transformer_obj_context_forward.1} parent=0
    _
  %s12 = ssub.s32 1, %s10
  %s13 = scalar_select 0, %s12, %s10
  // Predicated region
  $region2: #{transformer_obj_context_forward.1} parent=0 // pred_check
    _
  $region3: #{transformer_obj_context_forward.1} parent=0 // pred_check_branch
    %15 = sbr.rel (0) target = $region5
  $region4: #{transformer_obj_context_forward.1} parent=0 // pred_region
    _
  $region5: #{transformer_obj_context_forward.1} parent=0 // pred_fallthru
    _
  // Predicated region
  $region6: #{transformer_obj_context_forward.1} parent=0 // pred_check
    _
  $region7: #{transformer_obj_context_forward.1} parent=0 // pred_check_branch
    %17 = sbr.rel (0) target = $region9
  $region8: #{transformer_obj_context_forward.1} parent=0 // pred_region
    _
  $region9: #{transformer_obj_context_forward.1} parent=0 // pred_fallthru
    _
  // Predicated region
  $region10: #{transformer_obj_context_forward.1} parent=0 // pred_check
    _
  $region11: #{transformer_obj_context_forward.1} parent=0 // pred_check_branch
    %19 = sbr.rel (0) target = $region13
  $region12: #{transformer_obj_context_forward.1} parent=0 // pred_region
    _
  $region13: #{transformer_obj_context_forward.1} parent=0 // pred_fallthru
    _
  // Predicated region
  $region14: #{transformer_obj_context_forward.1} parent=0 // pred_check
    _
  $region15: #{transformer_obj_context_forward.1} parent=0 // pred_check_branch
    %21 = sbr.rel (0) target = $region17
  $region16: #{transformer_obj_context_forward.1} parent=0 // pred_region
    _
  $region17: #{transformer_obj_context_forward.1} parent=0 // pred_fallthru
    _
  // Predicated region
  $region18: #{transformer_obj_context_forward.1} parent=0 // pred_check
    _
  $region19: #{transformer_obj_context_forward.1} parent=0 // pred_check_branch
    %23 = sbr.rel (0) target = $region21
  $region20: #{transformer_obj_context_forward.1} parent=0 // pred_region
    _
  $region21: #{transformer_obj_context_forward.1} parent=0 // pred_fallthru
    _
  // Predicated region
  $region22: #{transformer_obj_context_forward.1} parent=0 // pred_check
    _
  $region23: #{transformer_obj_context_forward.1} parent=0 // pred_check_branch
    %25 = sbr.rel (0) target = $region25
  $region24: #{transformer_obj_context_forward.1} parent=0 // pred_region
    _
  $region25: #{transformer_obj_context_forward.1} parent=0 // pred_fallthru
    _
  // Predicated region
  $region26: #{transformer_obj_context_forward.1} parent=0 // pred_check
    _
  $region27: #{transformer_obj_context_forward.1} parent=0 // pred_check_branch
    %27 = sbr.rel (0) target = $region29
  $region28: #{transformer_obj_context_forward.1} parent=0 // pred_region
    _
  $region29: #{transformer_obj_context_forward.1} parent=0 // pred_fallthru
    _
  // Predicated region
  $region30: #{transformer_obj_context_forward.1} parent=0 // pred_check
    _
  $region31: #{transformer_obj_context_forward.1} parent=0 // pred_check_branch
    %29 = sbr.rel (0) target = $region33
  $region32: #{transformer_obj_context_forward.1} parent=0 // pred_region
    _
  $region33: #{transformer_obj_context_forward.1} parent=0 // pred_fallthru
    _
  // Predicated region
  $region34: #{transformer_obj_context_forward.1} parent=0 // pred_check
    _
  $region35: #{transformer_obj_context_forward.1} parent=0 // pred_check_branch
    %31 = sbr.rel (0) target = $region37
  $region36: #{transformer_obj_context_forward.1} parent=0 // pred_region
    _
  $region37: #{transformer_obj_context_forward.1} parent=0 // pred_fallthru
    _
  %v33 = vld [vmem:[%s1] sm:$0xff]
  %v34 = vld [vmem:[%s1 + $0x8] sm:$0xff]
  %vm35 = vcmask 130048
  %v36 = vsel %vm35, %v33, -inf
  %37 = vmax.xlane.f32.xlu0 %v36
  %v38 = vpop.xlane.xlu0 %37
  %v39 = vsel %vm35, %v34, -inf
  %40 = vmax.xlane.f32.xlu0 %v39
  %v41 = vpop.xlane.xlu0 %40
  %v42 = vsub.f32 %v33, %v38
  %v43 = vsub.f32 %v34, %v41
  %v44 = vmul.f32 %v42, 1.442695
  %v45 = vpow.pop %v44
  %v46 = vmul.f32 %v43, 1.442695
  %v47 = vpow.pop %v46
  %v48 = vsel %vm35, %v45, 0.0
  %49 = vadd.xlane.f32.xlu0 %v48
  %v50 = vpop.xlane.xlu0 %49
  %v51 = vsel %vm35, %v47, 0.0
  %52 = vadd.xlane.f32.xlu0 %v51
  %v53 = vpop.xlane.xlu0 %52
  %v54 = vrcp.pop %v50
  %v55 = vrcp.pop %v53
  %v56 = vmul.f32 %v45, %v54
  %v57 = vmul.f32 %v47, %v55
  %v58 = vpack.c.bf16 %v57, %v56
  %v59 = vld [vmem:[%s2] sm:$0xf]
  %v60 = vld [vmem:[%s2 + $0x4] sm:$0xf]
  %v63 = vunpack.c.l.b16 %v59
  %v64 = vunpack.c.l.b16 %v60
  %v65 = vpack.c.b16 %v64, %v63
  %v68 = vsel %vm35, %v58, 0
  %70 = vmatprep.subr.bf16.mxu0 0
  %71 = vmatpush1.bf16.msra.mxu0 %v65
  %72 = vmatprep.subr.bf16.mxu0 0
  %73 = vmatpush1.bf16.msra.mxu0 0
  %74 = vmatprep.subr.bf16.mxu0 0
  %75 = vmatpush1.bf16.msra.mxu0 0
  %76 = vmatprep.subr.bf16.mxu0 0
  %77 = vmatpush1.bf16.msra.mxu0 0
  %78 = vmatprep.subr.bf16.mxu0 0
  %79 = vmatpush1.bf16.msra.mxu0 0
  %80 = vmatprep.subr.bf16.mxu0 0
  %81 = vmatpush1.bf16.msra.mxu0 0
  %82 = vmatprep.subr.bf16.mxu0 0
  %83 = vmatpush1.bf16.msra.mxu0 0
  %84 = vmatprep.subr.bf16.mxu0 0
  %85 = vmatpush1.bf16.msra.mxu0 0
  %86 = vmatprep.subr.bf16.mxu0 0
  %87 = vmatpush1.bf16.msra.mxu0 0
  %88 = vmatprep.subr.bf16.mxu0 0
  %89 = vmatpush1.bf16.msra.mxu0 0
  %90 = vmatprep.subr.bf16.mxu0 0
  %91 = vmatpush1.bf16.msra.mxu0 0
  %92 = vmatprep.subr.bf16.mxu0 0
  %93 = vmatpush1.bf16.msra.mxu0 0
  %94 = vmatprep.subr.bf16.mxu0 0
  %95 = vmatpush1.bf16.msra.mxu0 0
  %96 = vmatprep.subr.bf16.mxu0 0
  %97 = vmatpush1.bf16.msra.mxu0 0
  %98 = vmatprep.subr.bf16.mxu0 0
  %99 = vmatpush1.bf16.msra.mxu0 0
  %100 = vmatprep.subr.bf16.mxu0 0
  %101 = vmatpush1.bf16.msra.mxu0 0
  %102 = vmatprep.mubr.bf16.mxu0 0
  %103 = vmatmul.mubr.bf16.gmra.mrb[0].mxu0 %v68
  %v104 = vpop.f32.mrb[0].mxu0
  %v105 = vadd.f32 0.0, %v104
  %v106 = vpop.f32.mrb[0].mxu0
  %v107 = vpop.f32.mrb[0].mxu0
  %v108 = vadd.f32 0.0, %v107
  %v109 = vpop.f32.mrb[0].mxu0
  %110 = vdwg.mxu0
  %v111 = vpack.c.bf16 %v34, %v33
  %v112 = vld [vmem:[%s2 + $0x8] sm:$0xf]
  %v113 = vld [vmem:[%s2 + $0xc] sm:$0xf]
  %v114 = vld [vmem:[%s4] sm:$0x1]
  %v115 = vlaneseq
  %v116 = vshrl.u32 %v115, 7
  %v117 = vsub.s32 0, %v116
  %v118 = vrot.slane %v114, %v117
  %120 = vrot.lane.b32.xlu0 %v111, 112
  %v121 = vpop.permute.xlu0 %120
  %v124 = vunpack.c.l.b16 %v112
  %v125 = vunpack.c.l.b16 %v113
  %v126 = vpack.c.b16 %v125, %v124
  %v129 = vsel %vm35, %v121, 0
  %131 = vmatprep.subr.bf16.mxu0 0
  %132 = vmatpush1.bf16.msra.mxu0 %v126
  %133 = vmatprep.subr.bf16.mxu0 0
  %134 = vmatpush1.bf16.msra.mxu0 0
  %135 = vmatprep.subr.bf16.mxu0 0
  %136 = vmatpush1.bf16.msra.mxu0 0
  %137 = vmatprep.subr.bf16.mxu0 0
  %138 = vmatpush1.bf16.msra.mxu0 0
  %139 = vmatprep.subr.bf16.mxu0 0
  %140 = vmatpush1.bf16.msra.mxu0 0
  %141 = vmatprep.subr.bf16.mxu0 0
  %142 = vmatpush1.bf16.msra.mxu0 0
  %143 = vmatprep.subr.bf16.mxu0 0
  %144 = vmatpush1.bf16.msra.mxu0 0
  %145 = vmatprep.subr.bf16.mxu0 0
  %146 = vmatpush1.bf16.msra.mxu0 0
  %147 = vmatprep.subr.bf16.mxu0 0
  %148 = vmatpush1.bf16.msra.mxu0 0
  %149 = vmatprep.subr.bf16.mxu0 0
  %150 = vmatpush1.bf16.msra.mxu0 0
  %151 = vmatprep.subr.bf16.mxu0 0
  %152 = vmatpush1.bf16.msra.mxu0 0
  %153 = vmatprep.subr.bf16.mxu0 0
  %154 = vmatpush1.bf16.msra.mxu0 0
  %155 = vmatprep.subr.bf16.mxu0 0
  %156 = vmatpush1.bf16.msra.mxu0 0
  %157 = vmatprep.subr.bf16.mxu0 0
  %158 = vmatpush1.bf16.msra.mxu0 0
  %159 = vmatprep.subr.bf16.mxu0 0
  %160 = vmatpush1.bf16.msra.mxu0 0
  %161 = vmatprep.subr.bf16.mxu0 0
  %162 = vmatpush1.bf16.msra.mxu0 0
  %163 = vmatprep.mubr.bf16.mxu0 0
  %164 = vmatmul.mubr.bf16.gmra.mrb[0].mxu0 %v129
  %v165 = vpop.f32.mrb[0].mxu0
  %v166 = vadd.f32 %v118, %v165
  %v167 = vpop.f32.mrb[0].mxu0
  %v168 = vpop.f32.mrb[0].mxu0
  %v169 = vadd.f32 %v118, %v168
  %v170 = vpop.f32.mrb[0].mxu0
  %171 = vdwg.mxu0
  %v172 = vmax.f32 %v166, 0.0
  %v173 = vmax.f32 %v169, 0.0
  %v174 = vpack.c.bf16 %v173, %v172
  %v175 = vld [vmem:[%s3] sm:$0xf]
  %v176 = vld [vmem:[%s3 + $0x4] sm:$0xf]
  %v177 = vld [vmem:[%s3 + $0x8] sm:$0xf]
  %v178 = vld [vmem:[%s3 + $0xc] sm:$0xf]
  %v179 = vld [vmem:[%s4 + $0x1] sm:$0x1]
  %v180 = vlaneseq
  %v181 = vshrl.u32 %v180, 7
  %v182 = vsub.s32 0, %v181
  %v183 = vrot.slane %v179, %v182
  %v188 = vunpack.c.l.b16 %v175
  %v189 = vunpack.c.l.b16 %v176
  %v190 = vunpack.c.l.b16 %v177
  %v191 = vunpack.c.l.b16 %v178
  %v192 = vpack.c.b16 %v189, %v188
  %v193 = vpack.c.b16 %v191, %v190
  %vm196 = vcmask 261120
  %v198 = vsel %vm196, %v174, 0
  %200 = vmatprep.subr.bf16.mxu0 0
  %201 = vmatpush1.bf16.msra.mxu0 %v192
  %202 = vmatprep.subr.bf16.mxu0 0
  %203 = vmatpush1.bf16.msra.mxu0 %v193
  %204 = vmatprep.subr.bf16.mxu0 0
  %205 = vmatpush1.bf16.msra.mxu0 0
  %206 = vmatprep.subr.bf16.mxu0 0
  %207 = vmatpush1.bf16.msra.mxu0 0
  %208 = vmatprep.subr.bf16.mxu0 0
  %209 = vmatpush1.bf16.msra.mxu0 0
  %210 = vmatprep.subr.bf16.mxu0 0
  %211 = vmatpush1.bf16.msra.mxu0 0
  %212 = vmatprep.subr.bf16.mxu0 0
  %213 = vmatpush1.bf16.msra.mxu0 0
  %214 = vmatprep.subr.bf16.mxu0 0
  %215 = vmatpush1.bf16.msra.mxu0 0
  %216 = vmatprep.subr.bf16.mxu0 0
  %217 = vmatpush1.bf16.msra.mxu0 0
  %218 = vmatprep.subr.bf16.mxu0 0
  %219 = vmatpush1.bf16.msra.mxu0 0
  %220 = vmatprep.subr.bf16.mxu0 0
  %221 = vmatpush1.bf16.msra.mxu0 0
  %222 = vmatprep.subr.bf16.mxu0 0
  %223 = vmatpush1.bf16.msra.mxu0 0
  %224 = vmatprep.subr.bf16.mxu0 0
  %225 = vmatpush1.bf16.msra.mxu0 0
  %226 = vmatprep.subr.bf16.mxu0 0
  %227 = vmatpush1.bf16.msra.mxu0 0
  %228 = vmatprep.subr.bf16.mxu0 0
  %229 = vmatpush1.bf16.msra.mxu0 0
  %230 = vmatprep.subr.bf16.mxu0 0
  %231 = vmatpush1.bf16.msra.mxu0 0
  %232 = vmatprep.mubr.bf16.mxu0 0
  %233 = vmatmul.mubr.bf16.gmra.mrb[0].mxu0 %v198
  %v234 = vpop.f32.mrb[0].mxu0
  %v235 = vadd.f32 %v183, %v234
  %v236 = vpop.f32.mrb[0].mxu0
  %v237 = vpop.f32.mrb[0].mxu0
  %v238 = vadd.f32 %v183, %v237
  %v239 = vpop.f32.mrb[0].mxu0
  %240 = vdwg.mxu0
  %v241 = vmax.f32 %v235, 0.0
  %v242 = vmax.f32 %v238, 0.0
  %v243 = vld [vmem:[%s0] sm:$0xff]
  %v244 = vld [vmem:[%s0 + $0x8] sm:$0xff]
  %v245 = vpack.c.bf16 %v244, %v243
  %v246 = vld [vmem:[%s2 + $0x10] sm:$0xf]
  %v247 = vld [vmem:[%s2 + $0x14] sm:$0xf]
  %v248 = vld [vmem:[%s2 + $0x18] sm:$0xf]
  %v249 = vld [vmem:[%s2 + $0x1c] sm:$0xf]
  %v250 = vld [vmem:[%s2 + $0x20] sm:$0xf]
  %v251 = vld [vmem:[%s2 + $0x24] sm:$0xf]
  %v252 = vld [vmem:[%s2 + $0x28] sm:$0xf]
  %v253 = vld [vmem:[%s2 + $0x2c] sm:$0xf]
  %v254 = vpack.c.bf16 %v108, %v105
  %v255 = vld [vmem:[%s2 + $0x30] sm:$0xf]
  %v256 = vld [vmem:[%s2 + $0x34] sm:$0xf]
  %v257 = vld [vmem:[%s2 + $0x38] sm:$0xf]
  %v258 = vld [vmem:[%s2 + $0x3c] sm:$0xf]
  %v263 = vunpack.c.l.b16 %v255
  %v264 = vunpack.c.l.b16 %v256
  %v265 = vunpack.c.l.b16 %v257
  %v266 = vunpack.c.l.b16 %v258
  %v267 = vpack.c.b16 %v264, %v263
  %v268 = vpack.c.b16 %v266, %v265
  %v272 = vsel %vm196, %v254, 0
  %274 = vmatprep.subr.bf16.mxu0 0
  %275 = vmatpush1.bf16.msra.mxu0 %v267
  %276 = vmatprep.subr.bf16.mxu0 0
  %277 = vmatpush1.bf16.msra.mxu0 %v268
  %278 = vmatprep.subr.bf16.mxu0 0
  %279 = vmatpush1.bf16.msra.mxu0 0
  %280 = vmatprep.subr.bf16.mxu0 0
  %281 = vmatpush1.bf16.msra.mxu0 0
  %282 = vmatprep.subr.bf16.mxu0 0
  %283 = vmatpush1.bf16.msra.mxu0 0
  %284 = vmatprep.subr.bf16.mxu0 0
  %285 = vmatpush1.bf16.msra.mxu0 0
  %286 = vmatprep.subr.bf16.mxu0 0
  %287 = vmatpush1.bf16.msra.mxu0 0
  %288 = vmatprep.subr.bf16.mxu0 0
  %289 = vmatpush1.bf16.msra.mxu0 0
  %290 = vmatprep.subr.bf16.mxu0 0
  %291 = vmatpush1.bf16.msra.mxu0 0
  %292 = vmatprep.subr.bf16.mxu0 0
  %293 = vmatpush1.bf16.msra.mxu0 0
  %294 = vmatprep.subr.bf16.mxu0 0
  %295 = vmatpush1.bf16.msra.mxu0 0
  %296 = vmatprep.subr.bf16.mxu0 0
  %297 = vmatpush1.bf16.msra.mxu0 0
  %298 = vmatprep.subr.bf16.mxu0 0
  %299 = vmatpush1.bf16.msra.mxu0 0
  %300 = vmatprep.subr.bf16.mxu0 0
  %301 = vmatpush1.bf16.msra.mxu0 0
  %302 = vmatprep.subr.bf16.mxu0 0
  %303 = vmatpush1.bf16.msra.mxu0 0
  %304 = vmatprep.subr.bf16.mxu0 0
  %305 = vmatpush1.bf16.msra.mxu0 0
  %306 = vmatprep.mubr.bf16.mxu0 0
  %307 = vmatmul.mubr.bf16.gmra.mrb[0].mxu0 %v272
  %v308 = vpop.f32.mrb[0].mxu0
  %v309 = vadd.f32 0.0, %v308
  %v310 = vpop.f32.mrb[0].mxu0
  %v311 = vpop.f32.mrb[0].mxu0
  %v312 = vadd.f32 0.0, %v311
  %v313 = vpop.f32.mrb[0].mxu0
  %314 = vdwg.mxu0
  %v323 = vunpack.c.l.b16 %v246
  %v324 = vunpack.c.l.b16 %v247
  %v325 = vunpack.c.l.b16 %v248
  %v326 = vunpack.c.l.b16 %v249
  %v327 = vunpack.c.l.b16 %v250
  %v328 = vunpack.c.l.b16 %v251
  %v329 = vunpack.c.l.b16 %v252
  %v330 = vunpack.c.l.b16 %v253
  %v331 = vpack.c.b16 %v324, %v323
  %v332 = vpack.c.b16 %v326, %v325
  %v333 = vpack.c.b16 %v328, %v327
  %v334 = vpack.c.b16 %v330, %v329
  %vm339 = vcmask 523264
  %v341 = vsel %vm339, %v245, 0
  %343 = vmatprep.subr.bf16.mxu0 0
  %344 = vmatpush1.bf16.msra.mxu0 %v331
  %345 = vmatprep.subr.bf16.mxu0 0
  %346 = vmatpush1.bf16.msra.mxu0 %v332
  %347 = vmatprep.subr.bf16.mxu0 0
  %348 = vmatpush1.bf16.msra.mxu0 %v333
  %349 = vmatprep.subr.bf16.mxu0 0
  %350 = vmatpush1.bf16.msra.mxu0 %v334
  %351 = vmatprep.subr.bf16.mxu0 0
  %352 = vmatpush1.bf16.msra.mxu0 0
  %353 = vmatprep.subr.bf16.mxu0 0
  %354 = vmatpush1.bf16.msra.mxu0 0
  %355 = vmatprep.subr.bf16.mxu0 0
  %356 = vmatpush1.bf16.msra.mxu0 0
  %357 = vmatprep.subr.bf16.mxu0 0
  %358 = vmatpush1.bf16.msra.mxu0 0
  %359 = vmatprep.subr.bf16.mxu0 0
  %360 = vmatpush1.bf16.msra.mxu0 0
  %361 = vmatprep.subr.bf16.mxu0 0
  %362 = vmatpush1.bf16.msra.mxu0 0
  %363 = vmatprep.subr.bf16.mxu0 0
  %364 = vmatpush1.bf16.msra.mxu0 0
  %365 = vmatprep.subr.bf16.mxu0 0
  %366 = vmatpush1.bf16.msra.mxu0 0
  %367 = vmatprep.subr.bf16.mxu0 0
  %368 = vmatpush1.bf16.msra.mxu0 0
  %369 = vmatprep.subr.bf16.mxu0 0
  %370 = vmatpush1.bf16.msra.mxu0 0
  %371 = vmatprep.subr.bf16.mxu0 0
  %372 = vmatpush1.bf16.msra.mxu0 0
  %373 = vmatprep.subr.bf16.mxu0 0
  %374 = vmatpush1.bf16.msra.mxu0 0
  %375 = vmatprep.mubr.bf16.mxu0 0
  %376 = vmatmul.mubr.bf16.gmra.mrb[0].mxu0 %v341
  %v377 = vpop.f32.mrb[0].mxu0
  %v378 = vadd.f32 %v309, %v377
  %v379 = vpop.f32.mrb[0].mxu0
  %v380 = vpop.f32.mrb[0].mxu0
  %v381 = vadd.f32 %v312, %v380
  %v382 = vpop.f32.mrb[0].mxu0
  %383 = vdwg.mxu0
  %v384 = vpack.c.bf16 %v242, %v241
  %v385 = vld [vmem:[%s2 + $0x40] sm:$0xf]
  %v386 = vld [vmem:[%s2 + $0x44] sm:$0xf]
  %v387 = vld [vmem:[%s2 + $0x48] sm:$0xf]
  %v388 = vld [vmem:[%s2 + $0x4c] sm:$0xf]
  %v389 = vld [vmem:[%s2 + $0x50] sm:$0xf]
  %v390 = vld [vmem:[%s2 + $0x54] sm:$0xf]
  %v391 = vld [vmem:[%s2 + $0x58] sm:$0xf]
  %v392 = vld [vmem:[%s2 + $0x5c] sm:$0xf]
  %v393 = vld [vmem:[%s2 + $0x60] sm:$0xf]
  %v394 = vld [vmem:[%s2 + $0x64] sm:$0xf]
  %v395 = vld [vmem:[%s2 + $0x68] sm:$0xf]
  %v396 = vld [vmem:[%s2 + $0x6c] sm:$0xf]
  %v397 = vld [vmem:[%s2 + $0x70] sm:$0xf]
  %v398 = vld [vmem:[%s2 + $0x74] sm:$0xf]
  %v399 = vld [vmem:[%s2 + $0x78] sm:$0xf]
  %v400 = vld [vmem:[%s2 + $0x7c] sm:$0xf]
  %v417 = vunpack.c.l.b16 %v385
  %v418 = vunpack.c.l.b16 %v386
  %v419 = vunpack.c.l.b16 %v387
  %v420 = vunpack.c.l.b16 %v388
  %v421 = vunpack.c.l.b16 %v389
  %v422 = vunpack.c.l.b16 %v390
  %v423 = vunpack.c.l.b16 %v391
  %v424 = vunpack.c.l.b16 %v392
  %v425 = vunpack.c.l.b16 %v393
  %v426 = vunpack.c.l.b16 %v394
  %v427 = vunpack.c.l.b16 %v395
  %v428 = vunpack.c.l.b16 %v396
  %v429 = vunpack.c.l.b16 %v397
  %v430 = vunpack.c.l.b16 %v398
  %v431 = vunpack.c.l.b16 %v399
  %v432 = vunpack.c.l.b16 %v400
  %v433 = vpack.c.b16 %v418, %v417
  %v434 = vpack.c.b16 %v420, %v419
  %v435 = vpack.c.b16 %v422, %v421
  %v436 = vpack.c.b16 %v424, %v423
  %v437 = vpack.c.b16 %v426, %v425
  %v438 = vpack.c.b16 %v428, %v427
  %v439 = vpack.c.b16 %v430, %v429
  %v440 = vpack.c.b16 %v432, %v431
  %449 = vmatprep.subr.bf16.mxu0 0
  %450 = vmatpush1.bf16.msra.mxu0 %v433
  %451 = vmatprep.subr.bf16.mxu0 0
  %452 = vmatpush1.bf16.msra.mxu0 %v434
  %453 = vmatprep.subr.bf16.mxu0 0
  %454 = vmatpush1.bf16.msra.mxu0 %v435
  %455 = vmatprep.subr.bf16.mxu0 0
  %456 = vmatpush1.bf16.msra.mxu0 %v436
  %457 = vmatprep.subr.bf16.mxu0 0
  %458 = vmatpush1.bf16.msra.mxu0 %v437
  %459 = vmatprep.subr.bf16.mxu0 0
  %460 = vmatpush1.bf16.msra.mxu0 %v438
  %461 = vmatprep.subr.bf16.mxu0 0
  %462 = vmatpush1.bf16.msra.mxu0 %v439
  %463 = vmatprep.subr.bf16.mxu0 0
  %464 = vmatpush1.bf16.msra.mxu0 %v440
  %465 = vmatprep.subr.bf16.mxu0 0
  %466 = vmatpush1.bf16.msra.mxu0 0
  %467 = vmatprep.subr.bf16.mxu0 0
  %468 = vmatpush1.bf16.msra.mxu0 0
  %469 = vmatprep.subr.bf16.mxu0 0
  %470 = vmatpush1.bf16.msra.mxu0 0
  %471 = vmatprep.subr.bf16.mxu0 0
  %472 = vmatpush1.bf16.msra.mxu0 0
  %473 = vmatprep.subr.bf16.mxu0 0
  %474 = vmatpush1.bf16.msra.mxu0 0
  %475 = vmatprep.subr.bf16.mxu0 0
  %476 = vmatpush1.bf16.msra.mxu0 0
  %477 = vmatprep.subr.bf16.mxu0 0
  %478 = vmatpush1.bf16.msra.mxu0 0
  %479 = vmatprep.subr.bf16.mxu0 0
  %480 = vmatpush1.bf16.msra.mxu0 0
  %481 = vmatprep.mubr.bf16.mxu0 0
  %482 = vmatmul.mubr.bf16.gmra.mrb[0].mxu0 %v384
  %v483 = vpop.f32.mrb[0].mxu0
  %v484 = vadd.f32 0.0, %v483
  %v485 = vpop.f32.mrb[0].mxu0
  %v486 = vpop.f32.mrb[0].mxu0
  %v487 = vadd.f32 0.0, %v486
  %v488 = vpop.f32.mrb[0].mxu0
  %489 = vdwg.mxu0
  %v490 = vadd.f32 %v378, %v484
  %v491 = vadd.f32 %v381, %v487
  %v492 = vld [vmem:[%s4 + $0x2] sm:$0x1]
  %v493 = vlaneseq
  %v494 = vshrl.u32 %v493, 7
  %v495 = vsub.s32 0, %v494
  %v496 = vrot.slane %v492, %v495
  %v497 = vadd.f32 %v490, %v496
  %v498 = vadd.f32 %v491, %v496
  %v499 = vlaneseq
  %v500 = vshrl.u32 %v499, 7
  %v501 = vadd.s32 %v500, 8
  %v502 = vlaneseq
  %v503 = vand.u32 %v502, 127
  %vm504 = vcmp.ge.s32.totalorder %v500, 8
  %vm505 = vcmp.ge.s32.totalorder %v501, 8
  %v506 = vsel %vm504, 1, 0
  %v507 = vsel %vm505, 1, 0
  %vm508 = vcmp.ge.s32.totalorder %v503, 8
  %v509 = vsel %vm508, 1, 0
  %vm510 = vcmp.ge.s32.totalorder %v500, 13
  %vm511 = vcmp.ge.s32.totalorder %v501, 13
  %v512 = vsel %vm510, 1, 0
  %v513 = vsel %vm511, 1, 0
  %v514 = vadd.s32 %v506, %v512
  %v515 = vadd.s32 %v507, %v513
  %vm516 = vcmp.ge.s32.totalorder %v503, 13
  %v517 = vsel %vm516, 1, 0
  %v518 = vadd.s32 %v509, %v517
  %vm519 = vcmp.eq.s32.totalorder %v514, %v518
  %vm520 = vcmp.eq.s32.totalorder %v515, %v518
  %v521 = vsel %vm519, 0.0, -1e+30
  %v522 = vsel %vm520, 0.0, -1e+30
  %v523 = vld [vmem:[%s8] sm:$0xff]
  %v524 = vpack.c.bf16 %v498, %v497
  %v525 = vld [vmem:[%s5] sm:$0xf]
  %v526 = vld [vmem:[%s5 + $0x4] sm:$0xf]
  %v527 = vld [vmem:[%s5 + $0x8] sm:$0xf]
  %v528 = vld [vmem:[%s5 + $0xc] sm:$0xf]
  %v529 = vlaneseq
  %v530 = vshrl.u32 %v529, 7
  %v531 = vsub.s32 0, %v530
  %v532 = vrot.slane %v523, %v531
  %v537 = vunpack.c.l.b16 %v525
  %v538 = vunpack.c.l.b16 %v526
  %v539 = vunpack.c.l.b16 %v527
  %v540 = vunpack.c.l.b16 %v528
  %v541 = vpack.c.b16 %v538, %v537
  %v542 = vpack.c.b16 %v540, %v539
  %v546 = vsel %vm196, %v524, 0
  %548 = vmatprep.subr.bf16.mxu0 0
  %549 = vmatpush1.bf16.msra.mxu0 %v541
  %550 = vmatprep.subr.bf16.mxu0 0
  %551 = vmatpush1.bf16.msra.mxu0 %v542
  %552 = vmatprep.subr.bf16.mxu0 0
  %553 = vmatpush1.bf16.msra.mxu0 0
  %554 = vmatprep.subr.bf16.mxu0 0
  %555 = vmatpush1.bf16.msra.mxu0 0
  %556 = vmatprep.subr.bf16.mxu0 0
  %557 = vmatpush1.bf16.msra.mxu0 0
  %558 = vmatprep.subr.bf16.mxu0 0
  %559 = vmatpush1.bf16.msra.mxu0 0
  %560 = vmatprep.subr.bf16.mxu0 0
  %561 = vmatpush1.bf16.msra.mxu0 0
  %562 = vmatprep.subr.bf16.mxu0 0
  %563 = vmatpush1.bf16.msra.mxu0 0
  %564 = vmatprep.subr.bf16.mxu0 0
  %565 = vmatpush1.bf16.msra.mxu0 0
  %566 = vmatprep.subr.bf16.mxu0 0
  %567 = vmatpush1.bf16.msra.mxu0 0
  %568 = vmatprep.subr.bf16.mxu0 0
  %569 = vmatpush1.bf16.msra.mxu0 0
  %570 = vmatprep.subr.bf16.mxu0 0
  %571 = vmatpush1.bf16.msra.mxu0 0
  %572 = vmatprep.subr.bf16.mxu0 0
  %573 = vmatpush1.bf16.msra.mxu0 0
  %574 = vmatprep.subr.bf16.mxu0 0
  %575 = vmatpush1.bf16.msra.mxu0 0
  %576 = vmatprep.subr.bf16.mxu0 0
  %577 = vmatpush1.bf16.msra.mxu0 0
  %578 = vmatprep.subr.bf16.mxu0 0
  %579 = vmatpush1.bf16.msra.mxu0 0
  %580 = vmatprep.mubr.bf16.mxu0 0
  %581 = vmatmul.mubr.bf16.gmra.mrb[0].mxu0 %v546
  %v582 = vpop.f32.mrb[0].mxu0
  %v583 = vadd.f32 %v532, %v582
  %v584 = vpop.f32.mrb[0].mxu0
  %v585 = vpop.f32.mrb[0].mxu0
  %v586 = vadd.f32 %v532, %v585
  %v587 = vpop.f32.mrb[0].mxu0
  %588 = vdwg.mxu0
  %591 = vrot.lane.b32.xlu0 %v583, 96
  %v592 = vpop.permute.xlu0 %591
  %593 = vrot.lane.b32.xlu0 %v586, 96
  %v594 = vpop.permute.xlu0 %593
  %v595 = vsel %vm35, %v583, 0
  %v597 = vsel %vm35, %v586, 0
  %v599 = vsel %vm35, %v592, 0
  %v601 = vsel %vm35, %v594, 0
  %603 = vmatprep.subr.mxu0 0.0
  %604 = vmatpush1.xpose.msra.mxu0 %v599
  %605 = vmatprep.subr.mxu0 0.0
  %606 = vmatpush1.xpose.msra.mxu0 %v601
  %607 = vmatprep.subr.mxu0 0.0
  %608 = vmatpush1.xpose.msra.mxu0 0.0
  %609 = vmatprep.subr.mxu0 0.0
  %610 = vmatpush1.xpose.msra.mxu0 0.0
  %611 = vmatprep.subr.mxu0 0.0
  %612 = vmatpush1.xpose.msra.mxu0 0.0
  %613 = vmatprep.subr.mxu0 0.0
  %614 = vmatpush1.xpose.msra.mxu0 0.0
  %615 = vmatprep.subr.mxu0 0.0
  %616 = vmatpush1.xpose.msra.mxu0 0.0
  %617 = vmatprep.subr.mxu0 0.0
  %618 = vmatpush1.xpose.msra.mxu0 0.0
  %619 = vmatprep.subr.mxu0 0.0
  %620 = vmatpush1.xpose.msra.mxu0 0.0
  %621 = vmatprep.subr.mxu0 0.0
  %622 = vmatpush1.xpose.msra.mxu0 0.0
  %623 = vmatprep.subr.mxu0 0.0
  %624 = vmatpush1.xpose.msra.mxu0 0.0
  %625 = vmatprep.subr.mxu0 0.0
  %626 = vmatpush1.xpose.msra.mxu0 0.0
  %627 = vmatprep.subr.mxu0 0.0
  %628 = vmatpush1.xpose.msra.mxu0 0.0
  %629 = vmatprep.subr.mxu0 0.0
  %630 = vmatpush1.xpose.msra.mxu0 0.0
  %631 = vmatprep.subr.mxu0 0.0
  %632 = vmatpush1.xpose.msra.mxu0 0.0
  %633 = vmatprep.subr.mxu0 0.0
  %634 = vmatpush1.xpose.msra.mxu0 0.0
  %635 = vmatprep.subr.mxu0 0.0
  %636 = vmatpush1.xpose.msra.mxu0 0.0
  %637 = vmatprep.subr.mxu0 0.0
  %638 = vmatpush1.xpose.msra.mxu0 0.0
  %639 = vmatprep.subr.mxu0 0.0
  %640 = vmatpush1.xpose.msra.mxu0 0.0
  %641 = vmatprep.subr.mxu0 0.0
  %642 = vmatpush1.xpose.msra.mxu0 0.0
  %643 = vmatprep.subr.mxu0 0.0
  %644 = vmatpush1.xpose.msra.mxu0 0.0
  %645 = vmatprep.subr.mxu0 0.0
  %646 = vmatpush1.xpose.msra.mxu0 0.0
  %647 = vmatprep.subr.mxu0 0.0
  %648 = vmatpush1.xpose.msra.mxu0 0.0
  %649 = vmatprep.subr.mxu0 0.0
  %650 = vmatpush1.xpose.msra.mxu0 0.0
  %651 = vmatprep.subr.mxu0 0.0
  %652 = vmatpush1.xpose.msra.mxu0 0.0
  %653 = vmatprep.subr.mxu0 0.0
  %654 = vmatpush1.xpose.msra.mxu0 0.0
  %655 = vmatprep.subr.mxu0 0.0
  %656 = vmatpush1.xpose.msra.mxu0 0.0
  %657 = vmatprep.subr.mxu0 0.0
  %658 = vmatpush1.xpose.msra.mxu0 0.0
  %659 = vmatprep.subr.mxu0 0.0
  %660 = vmatpush1.xpose.msra.mxu0 0.0
  %661 = vmatprep.subr.mxu0 0.0
  %662 = vmatpush1.xpose.msra.mxu0 0.0
  %663 = vmatprep.subr.mxu0 0.0
  %664 = vmatpush1.xpose.msra.mxu0 0.0
  %665 = vmatprep.subr.mxu0 0.0
  %666 = vmatpush1.xpose.msra.mxu0 0.0
  %667 = vmatprep.mubr.f32.mxu0 0.0
  %668 = vmatmul.mubr.f32.gmra.mrb[0].mxu0 %v595
  %v669 = vpop.f32.mrb[0].mxu0
  %v670 = vadd.f32 0.0, %v669
  %v671 = vpop.f32.mrb[0].mxu0
  %672 = vmatprep.mubr.f32.mxu0 0.0
  %673 = vmatmul.mubr.f32.gmra.mrb[0].mxu0 %v597
  %v674 = vpop.f32.mrb[0].mxu0
  %v675 = vadd.f32 0.0, %v674
  %v676 = vpop.f32.mrb[0].mxu0
  %677 = vdwg.mxu0
  %v678 = vmul.f32 %v670, 0.25
  %v679 = vmul.f32 %v675, 0.25
  %v680 = vadd.f32 %v678, %v521
  %v681 = vadd.f32 %v679, %v522
  %v682 = vsel %vm35, %v680, -inf
  %683 = vmax.xlane.f32.xlu0 %v682
  %v684 = vpop.xlane.xlu0 %683
  %v685 = vsel %vm35, %v681, -inf
  %686 = vmax.xlane.f32.xlu0 %v685
  %v687 = vpop.xlane.xlu0 %686
  %v688 = vsub.f32 %v680, %v684
  %v689 = vsub.f32 %v681, %v687
  %v690 = vmul.f32 %v688, 1.442695
  %v691 = vpow.pop %v690
  %v692 = vmul.f32 %v689, 1.442695
  %v693 = vpow.pop %v692
  %v694 = vsel %vm35, %v691, 0.0
  %695 = vadd.xlane.f32.xlu0 %v694
  %v696 = vpop.xlane.xlu0 %695
  %v697 = vsel %vm35, %v693, 0.0
  %698 = vadd.xlane.f32.xlu0 %v697
  %v699 = vpop.xlane.xlu0 %698
  %v700 = vrcp.pop %v696
  %v701 = vrcp.pop %v699
  %v702 = vmul.f32 %v691, %v700
  %v703 = vmul.f32 %v693, %v701
  %704 = vrot.lane.b32.xlu0 %v583, 64
  %v705 = vpop.permute.xlu0 %704
  %706 = vrot.lane.b32.xlu0 %v586, 64
  %v707 = vpop.permute.xlu0 %706
  %v711 = vsel %vm35, %v702, 0
  %v714 = vsel %vm35, %v703, 0
  %716 = vmatprep.subr.mxu0 0.0
  %717 = vmatpush1.msra.mxu0 %v705
  %718 = vmatprep.subr.mxu0 0.0
  %719 = vmatpush1.msra.mxu0 %v707
  %720 = vmatprep.subr.mxu0 0.0
  %721 = vmatpush1.msra.mxu0 0.0
  %722 = vmatprep.subr.mxu0 0.0
  %723 = vmatpush1.msra.mxu0 0.0
  %724 = vmatprep.subr.mxu0 0.0
  %725 = vmatpush1.msra.mxu0 0.0
  %726 = vmatprep.subr.mxu0 0.0
  %727 = vmatpush1.msra.mxu0 0.0
  %728 = vmatprep.subr.mxu0 0.0
  %729 = vmatpush1.msra.mxu0 0.0
  %730 = vmatprep.subr.mxu0 0.0
  %731 = vmatpush1.msra.mxu0 0.0
  %732 = vmatprep.subr.mxu0 0.0
  %733 = vmatpush1.msra.mxu0 0.0
  %734 = vmatprep.subr.mxu0 0.0
  %735 = vmatpush1.msra.mxu0 0.0
  %736 = vmatprep.subr.mxu0 0.0
  %737 = vmatpush1.msra.mxu0 0.0
  %738 = vmatprep.subr.mxu0 0.0
  %739 = vmatpush1.msra.mxu0 0.0
  %740 = vmatprep.subr.mxu0 0.0
  %741 = vmatpush1.msra.mxu0 0.0
  %742 = vmatprep.subr.mxu0 0.0
  %743 = vmatpush1.msra.mxu0 0.0
  %744 = vmatprep.subr.mxu0 0.0
  %745 = vmatpush1.msra.mxu0 0.0
  %746 = vmatprep.subr.mxu0 0.0
  %747 = vmatpush1.msra.mxu0 0.0
  %748 = vmatprep.subr.mxu0 0.0
  %749 = vmatpush1.msra.mxu0 0.0
  %750 = vmatprep.subr.mxu0 0.0
  %751 = vmatpush1.msra.mxu0 0.0
  %752 = vmatprep.subr.mxu0 0.0
  %753 = vmatpush1.msra.mxu0 0.0
  %754 = vmatprep.subr.mxu0 0.0
  %755 = vmatpush1.msra.mxu0 0.0
  %756 = vmatprep.subr.mxu0 0.0
  %757 = vmatpush1.msra.mxu0 0.0
  %758 = vmatprep.subr.mxu0 0.0
  %759 = vmatpush1.msra.mxu0 0.0
  %760 = vmatprep.subr.mxu0 0.0
  %761 = vmatpush1.msra.mxu0 0.0
  %762 = vmatprep.subr.mxu0 0.0
  %763 = vmatpush1.msra.mxu0 0.0
  %764 = vmatprep.subr.mxu0 0.0
  %765 = vmatpush1.msra.mxu0 0.0
  %766 = vmatprep.subr.mxu0 0.0
  %767 = vmatpush1.msra.mxu0 0.0
  %768 = vmatprep.subr.mxu0 0.0
  %769 = vmatpush1.msra.mxu0 0.0
  %770 = vmatprep.subr.mxu0 0.0
  %771 = vmatpush1.msra.mxu0 0.0
  %772 = vmatprep.subr.mxu0 0.0
  %773 = vmatpush1.msra.mxu0 0.0
  %774 = vmatprep.subr.mxu0 0.0
  %775 = vmatpush1.msra.mxu0 0.0
  %776 = vmatprep.subr.mxu0 0.0
  %777 = vmatpush1.msra.mxu0 0.0
  %778 = vmatprep.subr.mxu0 0.0
  %779 = vmatpush1.msra.mxu0 0.0
  %780 = vmatprep.mubr.f32.mxu0 0.0
  %781 = vmatmul.mubr.f32.gmra.mrb[0].mxu0 %v711
  %v782 = vpop.f32.mrb[0].mxu0
  %v783 = vadd.f32 0.0, %v782
  %v784 = vpop.f32.mrb[0].mxu0
  %785 = vmatprep.mubr.f32.mxu0 0.0
  %786 = vmatmul.mubr.f32.gmra.mrb[0].mxu0 %v714
  %v787 = vpop.f32.mrb[0].mxu0
  %v788 = vadd.f32 0.0, %v787
  %v789 = vpop.f32.mrb[0].mxu0
  %790 = vdwg.mxu0
  %791 = vrot.lane.b32.xlu0 %v583, 112
  %v792 = vpop.permute.xlu0 %791
  %793 = vrot.lane.b32.xlu0 %v586, 112
  %v794 = vpop.permute.xlu0 %793
  %795 = vrot.lane.b32.xlu0 %v583, 80
  %v796 = vpop.permute.xlu0 %795
  %797 = vrot.lane.b32.xlu0 %v586, 80
  %v798 = vpop.permute.xlu0 %797
  %v799 = vsel %vm35, %v792, 0
  %v801 = vsel %vm35, %v794, 0
  %v803 = vsel %vm35, %v796, 0
  %v805 = vsel %vm35, %v798, 0
  %807 = vmatprep.subr.mxu0 0.0
  %808 = vmatpush1.xpose.msra.mxu0 %v803
  %809 = vmatprep.subr.mxu0 0.0
  %810 = vmatpush1.xpose.msra.mxu0 %v805
  %811 = vmatprep.subr.mxu0 0.0
  %812 = vmatpush1.xpose.msra.mxu0 0.0
  %813 = vmatprep.subr.mxu0 0.0
  %814 = vmatpush1.xpose.msra.mxu0 0.0
  %815 = vmatprep.subr.mxu0 0.0
  %816 = vmatpush1.xpose.msra.mxu0 0.0
  %817 = vmatprep.subr.mxu0 0.0
  %818 = vmatpush1.xpose.msra.mxu0 0.0
  %819 = vmatprep.subr.mxu0 0.0
  %820 = vmatpush1.xpose.msra.mxu0 0.0
  %821 = vmatprep.subr.mxu0 0.0
  %822 = vmatpush1.xpose.msra.mxu0 0.0
  %823 = vmatprep.subr.mxu0 0.0
  %824 = vmatpush1.xpose.msra.mxu0 0.0
  %825 = vmatprep.subr.mxu0 0.0
  %826 = vmatpush1.xpose.msra.mxu0 0.0
  %827 = vmatprep.subr.mxu0 0.0
  %828 = vmatpush1.xpose.msra.mxu0 0.0
  %829 = vmatprep.subr.mxu0 0.0
  %830 = vmatpush1.xpose.msra.mxu0 0.0
  %831 = vmatprep.subr.mxu0 0.0
  %832 = vmatpush1.xpose.msra.mxu0 0.0
  %833 = vmatprep.subr.mxu0 0.0
  %834 = vmatpush1.xpose.msra.mxu0 0.0
  %835 = vmatprep.subr.mxu0 0.0
  %836 = vmatpush1.xpose.msra.mxu0 0.0
  %837 = vmatprep.subr.mxu0 0.0
  %838 = vmatpush1.xpose.msra.mxu0 0.0
  %839 = vmatprep.subr.mxu0 0.0
  %840 = vmatpush1.xpose.msra.mxu0 0.0
  %841 = vmatprep.subr.mxu0 0.0
  %842 = vmatpush1.xpose.msra.mxu0 0.0
  %843 = vmatprep.subr.mxu0 0.0
  %844 = vmatpush1.xpose.msra.mxu0 0.0
  %845 = vmatprep.subr.mxu0 0.0
  %846 = vmatpush1.xpose.msra.mxu0 0.0
  %847 = vmatprep.subr.mxu0 0.0
  %848 = vmatpush1.xpose.msra.mxu0 0.0
  %849 = vmatprep.subr.mxu0 0.0
  %850 = vmatpush1.xpose.msra.mxu0 0.0
  %851 = vmatprep.subr.mxu0 0.0
  %852 = vmatpush1.xpose.msra.mxu0 0.0
  %853 = vmatprep.subr.mxu0 0.0
  %854 = vmatpush1.xpose.msra.mxu0 0.0
  %855 = vmatprep.subr.mxu0 0.0
  %856 = vmatpush1.xpose.msra.mxu0 0.0
  %857 = vmatprep.subr.mxu0 0.0
  %858 = vmatpush1.xpose.msra.mxu0 0.0
  %859 = vmatprep.subr.mxu0 0.0
  %860 = vmatpush1.xpose.msra.mxu0 0.0
  %861 = vmatprep.subr.mxu0 0.0
  %862 = vmatpush1.xpose.msra.mxu0 0.0
  %863 = vmatprep.subr.mxu0 0.0
  %864 = vmatpush1.xpose.msra.mxu0 0.0
  %865 = vmatprep.subr.mxu0 0.0
  %866 = vmatpush1.xpose.msra.mxu0 0.0
  %867 = vmatprep.subr.mxu0 0.0
  %868 = vmatpush1.xpose.msra.mxu0 0.0
  %869 = vmatprep.subr.mxu0 0.0
  %870 = vmatpush1.xpose.msra.mxu0 0.0
  %871 = vmatprep.mubr.f32.mxu0 0.0
  %872 = vmatmul.mubr.f32.gmra.mrb[0].mxu0 %v799
  %v873 = vpop.f32.mrb[0].mxu0
  %v874 = vadd.f32 0.0, %v873
  %v875 = vpop.f32.mrb[0].mxu0
  %876 = vmatprep.mubr.f32.mxu0 0.0
  %877 = vmatmul.mubr.f32.gmra.mrb[0].mxu0 %v801
  %v878 = vpop.f32.mrb[0].mxu0
  %v879 = vadd.f32 0.0, %v878
  %v880 = vpop.f32.mrb[0].mxu0
  %881 = vdwg.mxu0
  %v882 = vmul.f32 %v874, 0.25
  %v883 = vmul.f32 %v879, 0.25
  %v884 = vadd.f32 %v882, %v521
  %v885 = vadd.f32 %v883, %v522
  %v886 = vsel %vm35, %v884, -inf
  %887 = vmax.xlane.f32.xlu0 %v886
  %v888 = vpop.xlane.xlu0 %887
  %v889 = vsel %vm35, %v885, -inf
  %890 = vmax.xlane.f32.xlu0 %v889
  %v891 = vpop.xlane.xlu0 %890
  %v892 = vsub.f32 %v884, %v888
  %v893 = vsub.f32 %v885, %v891
  %v894 = vmul.f32 %v892, 1.442695
  %v895 = vpow.pop %v894
  %v896 = vmul.f32 %v893, 1.442695
  %v897 = vpow.pop %v896
  %v898 = vsel %vm35, %v895, 0.0
  %899 = vadd.xlane.f32.xlu0 %v898
  %v900 = vpop.xlane.xlu0 %899
  %v901 = vsel %vm35, %v897, 0.0
  %902 = vadd.xlane.f32.xlu0 %v901
  %v903 = vpop.xlane.xlu0 %902
  %v904 = vrcp.pop %v900
  %v905 = vrcp.pop %v903
  %v906 = vmul.f32 %v895, %v904
  %v907 = vmul.f32 %v897, %v905
  %908 = vrot.lane.b32.xlu0 %v583, 48
  %v909 = vpop.permute.xlu0 %908
  %910 = vrot.lane.b32.xlu0 %v586, 48
  %v911 = vpop.permute.xlu0 %910
  %v915 = vsel %vm35, %v906, 0
  %v918 = vsel %vm35, %v907, 0
  %920 = vmatprep.subr.mxu0 0.0
  %921 = vmatpush1.msra.mxu0 %v909
  %922 = vmatprep.subr.mxu0 0.0
  %923 = vmatpush1.msra.mxu0 %v911
  %924 = vmatprep.subr.mxu0 0.0
  %925 = vmatpush1.msra.mxu0 0.0
  %926 = vmatprep.subr.mxu0 0.0
  %927 = vmatpush1.msra.mxu0 0.0
  %928 = vmatprep.subr.mxu0 0.0
  %929 = vmatpush1.msra.mxu0 0.0
  %930 = vmatprep.subr.mxu0 0.0
  %931 = vmatpush1.msra.mxu0 0.0
  %932 = vmatprep.subr.mxu0 0.0
  %933 = vmatpush1.msra.mxu0 0.0
  %934 = vmatprep.subr.mxu0 0.0
  %935 = vmatpush1.msra.mxu0 0.0
  %936 = vmatprep.subr.mxu0 0.0
  %937 = vmatpush1.msra.mxu0 0.0
  %938 = vmatprep.subr.mxu0 0.0
  %939 = vmatpush1.msra.mxu0 0.0
  %940 = vmatprep.subr.mxu0 0.0
  %941 = vmatpush1.msra.mxu0 0.0
  %942 = vmatprep.subr.mxu0 0.0
  %943 = vmatpush1.msra.mxu0 0.0
  %944 = vmatprep.subr.mxu0 0.0
  %945 = vmatpush1.msra.mxu0 0.0
  %946 = vmatprep.subr.mxu0 0.0
  %947 = vmatpush1.msra.mxu0 0.0
  %948 = vmatprep.subr.mxu0 0.0
  %949 = vmatpush1.msra.mxu0 0.0
  %950 = vmatprep.subr.mxu0 0.0
  %951 = vmatpush1.msra.mxu0 0.0
  %952 = vmatprep.subr.mxu0 0.0
  %953 = vmatpush1.msra.mxu0 0.0
  %954 = vmatprep.subr.mxu0 0.0
  %955 = vmatpush1.msra.mxu0 0.0
  %956 = vmatprep.subr.mxu0 0.0
  %957 = vmatpush1.msra.mxu0 0.0
  %958 = vmatprep.subr.mxu0 0.0
  %959 = vmatpush1.msra.mxu0 0.0
  %960 = vmatprep.subr.mxu0 0.0
  %961 = vmatpush1.msra.mxu0 0.0
  %962 = vmatprep.subr.mxu0 0.0
  %963 = vmatpush1.msra.mxu0 0.0
  %964 = vmatprep.subr.mxu0 0.0
  %965 = vmatpush1.msra.mxu0 0.0
  %966 = vmatprep.subr.mxu0 0.0
  %967 = vmatpush1.msra.mxu0 0.0
  %968 = vmatprep.subr.mxu0 0.0
  %969 = vmatpush1.msra.mxu0 0.0
  %970 = vmatprep.subr.mxu0 0.0
  %971 = vmatpush1.msra.mxu0 0.0
  %972 = vmatprep.subr.mxu0 0.0
  %973 = vmatpush1.msra.mxu0 0.0
  %974 = vmatprep.subr.mxu0 0.0
  %975 = vmatpush1.msra.mxu0 0.0
  %976 = vmatprep.subr.mxu0 0.0
  %977 = vmatpush1.msra.mxu0 0.0
  %978 = vmatprep.subr.mxu0 0.0
  %979 = vmatpush1.msra.mxu0 0.0
  %980 = vmatprep.subr.mxu0 0.0
  %981 = vmatpush1.msra.mxu0 0.0
  %982 = vmatprep.subr.mxu0 0.0
  %983 = vmatpush1.msra.mxu0 0.0
  %984 = vmatprep.mubr.f32.mxu0 0.0
  %985 = vmatmul.mubr.f32.gmra.mrb[0].mxu0 %v915
  %v986 = vpop.f32.mrb[0].mxu0
  %v987 = vadd.f32 0.0, %v986
  %v988 = vpop.f32.mrb[0].mxu0
  %989 = vmatprep.mubr.f32.mxu0 0.0
  %990 = vmatmul.mubr.f32.gmra.mrb[0].mxu0 %v918
  %v991 = vpop.f32.mrb[0].mxu0
  %v992 = vadd.f32 0.0, %v991
  %v993 = vpop.f32.mrb[0].mxu0
  %994 = vdwg.mxu0
  %997 = vrot.lane.b32.xlu0 %v987, 16
  %v998 = vpop.permute.xlu0 %997
  %999 = vrot.lane.b32.xlu0 %v992, 16
  %v1000 = vpop.permute.xlu0 %999
  %v1003 = vsel %vm35, %v783, %v998
  %v1004 = vsel %vm35, %v788, %v1000
  %v1005 = vld [vmem:[%s6] sm:$0xf]
  %v1006 = vld [vmem:[%s6 + $0x4] sm:$0xf]
  %v1007 = vld [vmem:[%s6 + $0x8] sm:$0xf]
  %v1008 = vld [vmem:[%s6 + $0xc] sm:$0xf]
  %v1009 = vpack.c.bf16 %v1004, %v1003
  %v1010 = vlaneseq
  %v1011 = vshrl.u32 %v1010, 7
  %v1012 = vsub.s32 1, %v1011
  %v1013 = vrot.slane %v523, %v1012
  %v1018 = vunpack.c.l.b16 %v1005
  %v1019 = vunpack.c.l.b16 %v1006
  %v1020 = vunpack.c.l.b16 %v1007
  %v1021 = vunpack.c.l.b16 %v1008
  %v1022 = vpack.c.b16 %v1019, %v1018
  %v1023 = vpack.c.b16 %v1021, %v1020
  %v1027 = vsel %vm196, %v1009, 0
  %1029 = vmatprep.subr.bf16.mxu0 0
  %1030 = vmatpush1.bf16.msra.mxu0 %v1022
  %1031 = vmatprep.subr.bf16.mxu0 0
  %1032 = vmatpush1.bf16.msra.mxu0 %v1023
  %1033 = vmatprep.subr.bf16.mxu0 0
  %1034 = vmatpush1.bf16.msra.mxu0 0
  %1035 = vmatprep.subr.bf16.mxu0 0
  %1036 = vmatpush1.bf16.msra.mxu0 0
  %1037 = vmatprep.subr.bf16.mxu0 0
  %1038 = vmatpush1.bf16.msra.mxu0 0
  %1039 = vmatprep.subr.bf16.mxu0 0
  %1040 = vmatpush1.bf16.msra.mxu0 0
  %1041 = vmatprep.subr.bf16.mxu0 0
  %1042 = vmatpush1.bf16.msra.mxu0 0
  %1043 = vmatprep.subr.bf16.mxu0 0
  %1044 = vmatpush1.bf16.msra.mxu0 0
  %1045 = vmatprep.subr.bf16.mxu0 0
  %1046 = vmatpush1.bf16.msra.mxu0 0
  %1047 = vmatprep.subr.bf16.mxu0 0
  %1048 = vmatpush1.bf16.msra.mxu0 0
  %1049 = vmatprep.subr.bf16.mxu0 0
  %1050 = vmatpush1.bf16.msra.mxu0 0
  %1051 = vmatprep.subr.bf16.mxu0 0
  %1052 = vmatpush1.bf16.msra.mxu0 0
  %1053 = vmatprep.subr.bf16.mxu0 0
  %1054 = vmatpush1.bf16.msra.mxu0 0
  %1055 = vmatprep.subr.bf16.mxu0 0
  %1056 = vmatpush1.bf16.msra.mxu0 0
  %1057 = vmatprep.subr.bf16.mxu0 0
  %1058 = vmatpush1.bf16.msra.mxu0 0
  %1059 = vmatprep.subr.bf16.mxu0 0
  %1060 = vmatpush1.bf16.msra.mxu0 0
  %1061 = vmatprep.mubr.bf16.mxu0 0
  %1062 = vmatmul.mubr.bf16.gmra.mrb[0].mxu0 %v1027
  %v1063 = vpop.f32.mrb[0].mxu0
  %v1064 = vadd.f32 %v1013, %v1063
  %v1065 = vpop.f32.mrb[0].mxu0
  %v1066 = vpop.f32.mrb[0].mxu0
  %v1067 = vadd.f32 %v1013, %v1066
  %v1068 = vpop.f32.mrb[0].mxu0
  %1069 = vdwg.mxu0
  %v1070 = vadd.f32 %v1064, %v497
  %v1071 = vadd.f32 %v1067, %v498
  %v1072 = vsel %vm196, %v1070, 0.0
  %1073 = vadd.xlane.f32.xlu0 %v1072
  %v1074 = vpop.xlane.xlu0 %1073
  %v1075 = vsel %vm196, %v1071, 0.0
  %1076 = vadd.xlane.f32.xlu0 %v1075
  %v1077 = vpop.xlane.xlu0 %1076
  %v1078 = vrcp.pop 32.0
  %v1079 = vmul.f32 %v1074, %v1078
  %v1080 = vmul.f32 %v1077, %v1078
  %v1081 = vsub.f32 %v1070, %v1079
  %v1082 = vsub.f32 %v1071, %v1080
  %v1083 = vmul.f32 %v1081, %v1081
  %v1084 = vmul.f32 %v1082, %v1082
  %v1085 = vsel %vm196, %v1083, 0.0
  %1086 = vadd.xlane.f32.xlu0 %v1085
  %v1087 = vpop.xlane.xlu0 %1086
  %v1088 = vsel %vm196, %v1084, 0.0
  %1089 = vadd.xlane.f32.xlu0 %v1088
  %v1090 = vpop.xlane.xlu0 %1089
  %v1091 = vmul.f32 %v1087, %v1078
  %v1092 = vmul.f32 %v1090, %v1078
  %v1093 = vadd.f32 %v1091, 1e-05
  %v1094 = vadd.f32 %v1092, 1e-05
  %v1095 = vrsqrt.pop %v1093
  %v1096 = vrsqrt.pop %v1094
  %v1097 = vmul.f32 %v1081, %v1095
  %v1098 = vmul.f32 %v1082, %v1096
  %v1099 = vlaneseq
  %v1100 = vshrl.u32 %v1099, 7
  %v1101 = vsub.s32 2, %v1100
  %v1102 = vrot.slane %v523, %v1101
  %v1103 = vmul.f32 %v1097, %v1102
  %v1104 = vmul.f32 %v1098, %v1102
  %v1105 = vlaneseq
  %v1106 = vshrl.u32 %v1105, 7
  %v1107 = vsub.s32 3, %v1106
  %v1108 = vrot.slane %v523, %v1107
  %v1109 = vadd.f32 %v1103, %v1108
  %v1110 = vadd.f32 %v1104, %v1108
  %v1111 = vpack.c.bf16 %v1110, %v1109
  %v1112 = vlaneseq
  %v1113 = vshrl.u32 %v1112, 7
  %v1114 = vsub.s32 4, %v1113
  %v1115 = vrot.slane %v523, %v1114
  %1116 = vrot.lane.b32.xlu0 %v1022, 96
  %v1117 = vpop.permute.xlu0 %1116
  %1118 = vrot.lane.b32.xlu0 %v1023, 96
  %v1119 = vpop.permute.xlu0 %1118
  %v1123 = vsel %vm196, %v1111, 0
  %1125 = vmatprep.subr.bf16.mxu0 0
  %1126 = vmatpush1.bf16.msra.mxu0 %v1117
  %1127 = vmatprep.subr.bf16.mxu0 0
  %1128 = vmatpush1.bf16.msra.mxu0 %v1119
  %1129 = vmatprep.subr.bf16.mxu0 0
  %1130 = vmatpush1.bf16.msra.mxu0 0
  %1131 = vmatprep.subr.bf16.mxu0 0
  %1132 = vmatpush1.bf16.msra.mxu0 0
  %1133 = vmatprep.subr.bf16.mxu0 0
  %1134 = vmatpush1.bf16.msra.mxu0 0
  %1135 = vmatprep.subr.bf16.mxu0 0
  %1136 = vmatpush1.bf16.msra.mxu0 0
  %1137 = vmatprep.subr.bf16.mxu0 0
  %1138 = vmatpush1.bf16.msra.mxu0 0
  %1139 = vmatprep.subr.bf16.mxu0 0
  %1140 = vmatpush1.bf16.msra.mxu0 0
  %1141 = vmatprep.subr.bf16.mxu0 0
  %1142 = vmatpush1.bf16.msra.mxu0 0
  %1143 = vmatprep.subr.bf16.mxu0 0
  %1144 = vmatpush1.bf16.msra.mxu0 0
  %1145 = vmatprep.subr.bf16.mxu0 0
  %1146 = vmatpush1.bf16.msra.mxu0 0
  %1147 = vmatprep.subr.bf16.mxu0 0
  %1148 = vmatpush1.bf16.msra.mxu0 0
  %1149 = vmatprep.subr.bf16.mxu0 0
  %1150 = vmatpush1.bf16.msra.mxu0 0
  %1151 = vmatprep.subr.bf16.mxu0 0
  %1152 = vmatpush1.bf16.msra.mxu0 0
  %1153 = vmatprep.subr.bf16.mxu0 0
  %1154 = vmatpush1.bf16.msra.mxu0 0
  %1155 = vmatprep.subr.bf16.mxu0 0
  %1156 = vmatpush1.bf16.msra.mxu0 0
  %1157 = vmatprep.mubr.bf16.mxu0 0
  %1158 = vmatmul.mubr.bf16.gmra.mrb[0].mxu0 %v1123
  %v1159 = vpop.f32.mrb[0].mxu0
  %v1160 = vadd.f32 %v1115, %v1159
  %v1161 = vpop.f32.mrb[0].mxu0
  %v1162 = vpop.f32.mrb[0].mxu0
  %v1163 = vadd.f32 %v1115, %v1162
  %v1164 = vpop.f32.mrb[0].mxu0
  %1165 = vdwg.mxu0
  %v1166 = vmax.f32 %v1160, 0.0
  %v1167 = vmax.f32 %v1163, 0.0
  %v1168 = vpack.c.bf16 %v1167, %v1166
  %v1169 = vld [vmem:[%s7] sm:$0xf]
  %v1170 = vld [vmem:[%s7 + $0x4] sm:$0xf]
  %v1171 = vld [vmem:[%s7 + $0x8] sm:$0xf]
  %v1172 = vld [vmem:[%s7 + $0xc] sm:$0xf]
  %v1173 = vld [vmem:[%s7 + $0x10] sm:$0xf]
  %v1174 = vld [vmem:[%s7 + $0x14] sm:$0xf]
  %v1175 = vld [vmem:[%s7 + $0x18] sm:$0xf]
  %v1176 = vld [vmem:[%s7 + $0x1c] sm:$0xf]
  %v1177 = vlaneseq
  %v1178 = vshrl.u32 %v1177, 7
  %v1179 = vsub.s32 5, %v1178
  %v1180 = vrot.slane %v523, %v1179
  %v1189 = vunpack.c.l.b16 %v1169
  %v1190 = vunpack.c.l.b16 %v1170
  %v1191 = vunpack.c.l.b16 %v1171
  %v1192 = vunpack.c.l.b16 %v1172
  %v1193 = vunpack.c.l.b16 %v1173
  %v1194 = vunpack.c.l.b16 %v1174
  %v1195 = vunpack.c.l.b16 %v1175
  %v1196 = vunpack.c.l.b16 %v1176
  %v1197 = vpack.c.b16 %v1190, %v1189
  %v1198 = vpack.c.b16 %v1192, %v1191
  %v1199 = vpack.c.b16 %v1194, %v1193
  %v1200 = vpack.c.b16 %v1196, %v1195
  %v1206 = vsel %vm339, %v1168, 0
  %1208 = vmatprep.subr.bf16.mxu0 0
  %1209 = vmatpush1.bf16.msra.mxu0 %v1197
  %1210 = vmatprep.subr.bf16.mxu0 0
  %1211 = vmatpush1.bf16.msra.mxu0 %v1198
  %1212 = vmatprep.subr.bf16.mxu0 0
  %1213 = vmatpush1.bf16.msra.mxu0 %v1199
  %1214 = vmatprep.subr.bf16.mxu0 0
  %1215 = vmatpush1.bf16.msra.mxu0 %v1200
  %1216 = vmatprep.subr.bf16.mxu0 0
  %1217 = vmatpush1.bf16.msra.mxu0 0
  %1218 = vmatprep.subr.bf16.mxu0 0
  %1219 = vmatpush1.bf16.msra.mxu0 0
  %1220 = vmatprep.subr.bf16.mxu0 0
  %1221 = vmatpush1.bf16.msra.mxu0 0
  %1222 = vmatprep.subr.bf16.mxu0 0
  %1223 = vmatpush1.bf16.msra.mxu0 0
  %1224 = vmatprep.subr.bf16.mxu0 0
  %1225 = vmatpush1.bf16.msra.mxu0 0
  %1226 = vmatprep.subr.bf16.mxu0 0
  %1227 = vmatpush1.bf16.msra.mxu0 0
  %1228 = vmatprep.subr.bf16.mxu0 0
  %1229 = vmatpush1.bf16.msra.mxu0 0
  %1230 = vmatprep.subr.bf16.mxu0 0
  %1231 = vmatpush1.bf16.msra.mxu0 0
  %1232 = vmatprep.subr.bf16.mxu0 0
  %1233 = vmatpush1.bf16.msra.mxu0 0
  %1234 = vmatprep.subr.bf16.mxu0 0
  %1235 = vmatpush1.bf16.msra.mxu0 0
  %1236 = vmatprep.subr.bf16.mxu0 0
  %1237 = vmatpush1.bf16.msra.mxu0 0
  %1238 = vmatprep.subr.bf16.mxu0 0
  %1239 = vmatpush1.bf16.msra.mxu0 0
  %1240 = vmatprep.mubr.bf16.mxu0 0
  %1241 = vmatmul.mubr.bf16.gmra.mrb[0].mxu0 %v1206
  %v1242 = vpop.f32.mrb[0].mxu0
  %v1243 = vadd.f32 %v1180, %v1242
  %v1244 = vpop.f32.mrb[0].mxu0
  %v1245 = vpop.f32.mrb[0].mxu0
  %v1246 = vadd.f32 %v1180, %v1245
  %v1247 = vpop.f32.mrb[0].mxu0
  %1248 = vdwg.mxu0
  %v1249 = vadd.f32 %v1243, %v1109
  %v1250 = vadd.f32 %v1246, %v1110
  %v1251 = vsel %vm196, %v1249, 0.0
  %1252 = vadd.xlane.f32.xlu0 %v1251
  %v1253 = vpop.xlane.xlu0 %1252
  %v1254 = vsel %vm196, %v1250, 0.0
  %1255 = vadd.xlane.f32.xlu0 %v1254
  %v1256 = vpop.xlane.xlu0 %1255
  %v1257 = vmul.f32 %v1253, %v1078
  %v1258 = vmul.f32 %v1256, %v1078
  %v1259 = vsub.f32 %v1249, %v1257
  %v1260 = vsub.f32 %v1250, %v1258
  %v1261 = vmul.f32 %v1259, %v1259
  %v1262 = vmul.f32 %v1260, %v1260
  %v1263 = vsel %vm196, %v1261, 0.0
  %1264 = vadd.xlane.f32.xlu0 %v1263
  %v1265 = vpop.xlane.xlu0 %1264
  %v1266 = vsel %vm196, %v1262, 0.0
  %1267 = vadd.xlane.f32.xlu0 %v1266
  %v1268 = vpop.xlane.xlu0 %1267
  %v1269 = vmul.f32 %v1265, %v1078
  %v1270 = vmul.f32 %v1268, %v1078
  %v1271 = vadd.f32 %v1269, 1e-05
  %v1272 = vadd.f32 %v1270, 1e-05
  %v1273 = vrsqrt.pop %v1271
  %v1274 = vrsqrt.pop %v1272
  %v1275 = vmul.f32 %v1259, %v1273
  %v1276 = vmul.f32 %v1260, %v1274
  %v1277 = vlaneseq
  %v1278 = vshrl.u32 %v1277, 7
  %v1279 = vsub.s32 6, %v1278
  %v1280 = vrot.slane %v523, %v1279
  %v1281 = vmul.f32 %v1275, %v1280
  %v1282 = vmul.f32 %v1276, %v1280
  %v1283 = vlaneseq
  %v1284 = vshrl.u32 %v1283, 7
  %v1285 = vsub.s32 7, %v1284
  %v1286 = vrot.slane %v523, %v1285
  %v1287 = vadd.f32 %v1281, %v1286
  %v1288 = vadd.f32 %v1282, %v1286
  %s1289 = scalar_lea.vmem %s8, 8
  %v1290 = vld [vmem:[%s1289] sm:$0xff]
  %v1291 = vpack.c.bf16 %v1288, %v1287
  %s1292 = scalar_lea.vmem %s5, 16
  %v1293 = vld [vmem:[%s1292] sm:$0xf]
  %v1294 = vld [vmem:[%s1292 + $0x4] sm:$0xf]
  %v1295 = vld [vmem:[%s1292 + $0x8] sm:$0xf]
  %v1296 = vld [vmem:[%s1292 + $0xc] sm:$0xf]
  %v1297 = vlaneseq
  %v1298 = vshrl.u32 %v1297, 7
  %v1299 = vsub.s32 0, %v1298
  %v1300 = vrot.slane %v1290, %v1299
  %v1305 = vunpack.c.l.b16 %v1293
  %v1306 = vunpack.c.l.b16 %v1294
  %v1307 = vunpack.c.l.b16 %v1295
  %v1308 = vunpack.c.l.b16 %v1296
  %v1309 = vpack.c.b16 %v1306, %v1305
  %v1310 = vpack.c.b16 %v1308, %v1307
  %v1314 = vsel %vm196, %v1291, 0
  %1316 = vmatprep.subr.bf16.mxu0 0
  %1317 = vmatpush1.bf16.msra.mxu0 %v1309
  %1318 = vmatprep.subr.bf16.mxu0 0
  %1319 = vmatpush1.bf16.msra.mxu0 %v1310
  %1320 = vmatprep.subr.bf16.mxu0 0
  %1321 = vmatpush1.bf16.msra.mxu0 0
  %1322 = vmatprep.subr.bf16.mxu0 0
  %1323 = vmatpush1.bf16.msra.mxu0 0
  %1324 = vmatprep.subr.bf16.mxu0 0
  %1325 = vmatpush1.bf16.msra.mxu0 0
  %1326 = vmatprep.subr.bf16.mxu0 0
  %1327 = vmatpush1.bf16.msra.mxu0 0
  %1328 = vmatprep.subr.bf16.mxu0 0
  %1329 = vmatpush1.bf16.msra.mxu0 0
  %1330 = vmatprep.subr.bf16.mxu0 0
  %1331 = vmatpush1.bf16.msra.mxu0 0
  %1332 = vmatprep.subr.bf16.mxu0 0
  %1333 = vmatpush1.bf16.msra.mxu0 0
  %1334 = vmatprep.subr.bf16.mxu0 0
  %1335 = vmatpush1.bf16.msra.mxu0 0
  %1336 = vmatprep.subr.bf16.mxu0 0
  %1337 = vmatpush1.bf16.msra.mxu0 0
  %1338 = vmatprep.subr.bf16.mxu0 0
  %1339 = vmatpush1.bf16.msra.mxu0 0
  %1340 = vmatprep.subr.bf16.mxu0 0
  %1341 = vmatpush1.bf16.msra.mxu0 0
  %1342 = vmatprep.subr.bf16.mxu0 0
  %1343 = vmatpush1.bf16.msra.mxu0 0
  %1344 = vmatprep.subr.bf16.mxu0 0
  %1345 = vmatpush1.bf16.msra.mxu0 0
  %1346 = vmatprep.subr.bf16.mxu0 0
  %1347 = vmatpush1.bf16.msra.mxu0 0
  %1348 = vmatprep.mubr.bf16.mxu0 0
  %1349 = vmatmul.mubr.bf16.gmra.mrb[0].mxu0 %v1314
  %v1350 = vpop.f32.mrb[0].mxu0
  %v1351 = vadd.f32 %v1300, %v1350
  %v1352 = vpop.f32.mrb[0].mxu0
  %v1353 = vpop.f32.mrb[0].mxu0
  %v1354 = vadd.f32 %v1300, %v1353
  %v1355 = vpop.f32.mrb[0].mxu0
  %1356 = vdwg.mxu0
  %1359 = vrot.lane.b32.xlu0 %v1351, 96
  %v1360 = vpop.permute.xlu0 %1359
  %1361 = vrot.lane.b32.xlu0 %v1354, 96
  %v1362 = vpop.permute.xlu0 %1361
  %v1363 = vsel %vm35, %v1351, 0
  %v1365 = vsel %vm35, %v1354, 0
  %v1367 = vsel %vm35, %v1360, 0
  %v1369 = vsel %vm35, %v1362, 0
  %1371 = vmatprep.subr.mxu0 0.0
  %1372 = vmatpush1.xpose.msra.mxu0 %v1367
  %1373 = vmatprep.subr.mxu0 0.0
  %1374 = vmatpush1.xpose.msra.mxu0 %v1369
  %1375 = vmatprep.subr.mxu0 0.0
  %1376 = vmatpush1.xpose.msra.mxu0 0.0
  %1377 = vmatprep.subr.mxu0 0.0
  %1378 = vmatpush1.xpose.msra.mxu0 0.0
  %1379 = vmatprep.subr.mxu0 0.0
  %1380 = vmatpush1.xpose.msra.mxu0 0.0
  %1381 = vmatprep.subr.mxu0 0.0
  %1382 = vmatpush1.xpose.msra.mxu0 0.0
  %1383 = vmatprep.subr.mxu0 0.0
  %1384 = vmatpush1.xpose.msra.mxu0 0.0
  %1385 = vmatprep.subr.mxu0 0.0
  %1386 = vmatpush1.xpose.msra.mxu0 0.0
  %1387 = vmatprep.subr.mxu0 0.0
  %1388 = vmatpush1.xpose.msra.mxu0 0.0
  %1389 = vmatprep.subr.mxu0 0.0
  %1390 = vmatpush1.xpose.msra.mxu0 0.0
  %1391 = vmatprep.subr.mxu0 0.0
  %1392 = vmatpush1.xpose.msra.mxu0 0.0
  %1393 = vmatprep.subr.mxu0 0.0
  %1394 = vmatpush1.xpose.msra.mxu0 0.0
  %1395 = vmatprep.subr.mxu0 0.0
  %1396 = vmatpush1.xpose.msra.mxu0 0.0
  %1397 = vmatprep.subr.mxu0 0.0
  %1398 = vmatpush1.xpose.msra.mxu0 0.0
  %1399 = vmatprep.subr.mxu0 0.0
  %1400 = vmatpush1.xpose.msra.mxu0 0.0
  %1401 = vmatprep.subr.mxu0 0.0
  %1402 = vmatpush1.xpose.msra.mxu0 0.0
  %1403 = vmatprep.subr.mxu0 0.0
  %1404 = vmatpush1.xpose.msra.mxu0 0.0
  %1405 = vmatprep.subr.mxu0 0.0
  %1406 = vmatpush1.xpose.msra.mxu0 0.0
  %1407 = vmatprep.subr.mxu0 0.0
  %1408 = vmatpush1.xpose.msra.mxu0 0.0
  %1409 = vmatprep.subr.mxu0 0.0
  %1410 = vmatpush1.xpose.msra.mxu0 0.0
  %1411 = vmatprep.subr.mxu0 0.0
  %1412 = vmatpush1.xpose.msra.mxu0 0.0
  %1413 = vmatprep.subr.mxu0 0.0
  %1414 = vmatpush1.xpose.msra.mxu0 0.0
  %1415 = vmatprep.subr.mxu0 0.0
  %1416 = vmatpush1.xpose.msra.mxu0 0.0
  %1417 = vmatprep.subr.mxu0 0.0
  %1418 = vmatpush1.xpose.msra.mxu0 0.0
  %1419 = vmatprep.subr.mxu0 0.0
  %1420 = vmatpush1.xpose.msra.mxu0 0.0
  %1421 = vmatprep.subr.mxu0 0.0
  %1422 = vmatpush1.xpose.msra.mxu0 0.0
  %1423 = vmatprep.subr.mxu0 0.0
  %1424 = vmatpush1.xpose.msra.mxu0 0.0
  %1425 = vmatprep.subr.mxu0 0.0
  %1426 = vmatpush1.xpose.msra.mxu0 0.0
  %1427 = vmatprep.subr.mxu0 0.0
  %1428 = vmatpush1.xpose.msra.mxu0 0.0
  %1429 = vmatprep.subr.mxu0 0.0
  %1430 = vmatpush1.xpose.msra.mxu0 0.0
  %1431 = vmatprep.subr.mxu0 0.0
  %1432 = vmatpush1.xpose.msra.mxu0 0.0
  %1433 = vmatprep.subr.mxu0 0.0
  %1434 = vmatpush1.xpose.msra.mxu0 0.0
  %1435 = vmatprep.mubr.f32.mxu0 0.0
  %1436 = vmatmul.mubr.f32.gmra.mrb[0].mxu0 %v1363
  %v1437 = vpop.f32.mrb[0].mxu0
  %v1438 = vadd.f32 0.0, %v1437
  %v1439 = vpop.f32.mrb[0].mxu0
  %1440 = vmatprep.mubr.f32.mxu0 0.0
  %1441 = vmatmul.mubr.f32.gmra.mrb[0].mxu0 %v1365
  %v1442 = vpop.f32.mrb[0].mxu0
  %v1443 = vadd.f32 0.0, %v1442
  %v1444 = vpop.f32.mrb[0].mxu0
  %1445 = vdwg.mxu0
  %v1446 = vmul.f32 %v1438, 0.25
  %v1447 = vmul.f32 %v1443, 0.25
  %v1448 = vadd.f32 %v1446, %v521
  %v1449 = vadd.f32 %v1447, %v522
  %v1450 = vsel %vm35, %v1448, -inf
  %1451 = vmax.xlane.f32.xlu0 %v1450
  %v1452 = vpop.xlane.xlu0 %1451
  %v1453 = vsel %vm35, %v1449, -inf
  %1454 = vmax.xlane.f32.xlu0 %v1453
  %v1455 = vpop.xlane.xlu0 %1454
  %v1456 = vsub.f32 %v1448, %v1452
  %v1457 = vsub.f32 %v1449, %v1455
  %v1458 = vmul.f32 %v1456, 1.442695
  %v1459 = vpow.pop %v1458
  %v1460 = vmul.f32 %v1457, 1.442695
  %v1461 = vpow.pop %v1460
  %v1462 = vsel %vm35, %v1459, 0.0
  %1463 = vadd.xlane.f32.xlu0 %v1462
  %v1464 = vpop.xlane.xlu0 %1463
  %v1465 = vsel %vm35, %v1461, 0.0
  %1466 = vadd.xlane.f32.xlu0 %v1465
  %v1467 = vpop.xlane.xlu0 %1466
  %v1468 = vrcp.pop %v1464
  %v1469 = vrcp.pop %v1467
  %v1470 = vmul.f32 %v1459, %v1468
  %v1471 = vmul.f32 %v1461, %v1469
  %1472 = vrot.lane.b32.xlu0 %v1351, 64
  %v1473 = vpop.permute.xlu0 %1472
  %1474 = vrot.lane.b32.xlu0 %v1354, 64
  %v1475 = vpop.permute.xlu0 %1474
  %v1479 = vsel %vm35, %v1470, 0
  %v1482 = vsel %vm35, %v1471, 0
  %1484 = vmatprep.subr.mxu0 0.0
  %1485 = vmatpush1.msra.mxu0 %v1473
  %1486 = vmatprep.subr.mxu0 0.0
  %1487 = vmatpush1.msra.mxu0 %v1475
  %1488 = vmatprep.subr.mxu0 0.0
  %1489 = vmatpush1.msra.mxu0 0.0
  %1490 = vmatprep.subr.mxu0 0.0
  %1491 = vmatpush1.msra.mxu0 0.0
  %1492 = vmatprep.subr.mxu0 0.0
  %1493 = vmatpush1.msra.mxu0 0.0
  %1494 = vmatprep.subr.mxu0 0.0
  %1495 = vmatpush1.msra.mxu0 0.0
  %1496 = vmatprep.subr.mxu0 0.0
  %1497 = vmatpush1.msra.mxu0 0.0
  %1498 = vmatprep.subr.mxu0 0.0
  %1499 = vmatpush1.msra.mxu0 0.0
  %1500 = vmatprep.subr.mxu0 0.0
  %1501 = vmatpush1.msra.mxu0 0.0
  %1502 = vmatprep.subr.mxu0 0.0
  %1503 = vmatpush1.msra.mxu0 0.0
  %1504 = vmatprep.subr.mxu0 0.0
  %1505 = vmatpush1.msra.mxu0 0.0
  %1506 = vmatprep.subr.mxu0 0.0
  %1507 = vmatpush1.msra.mxu0 0.0
  %1508 = vmatprep.subr.mxu0 0.0
  %1509 = vmatpush1.msra.mxu0 0.0
  %1510 = vmatprep.subr.mxu0 0.0
  %1511 = vmatpush1.msra.mxu0 0.0
  %1512 = vmatprep.subr.mxu0 0.0
  %1513 = vmatpush1.msra.mxu0 0.0
  %1514 = vmatprep.subr.mxu0 0.0
  %1515 = vmatpush1.msra.mxu0 0.0
  %1516 = vmatprep.subr.mxu0 0.0
  %1517 = vmatpush1.msra.mxu0 0.0
  %1518 = vmatprep.subr.mxu0 0.0
  %1519 = vmatpush1.msra.mxu0 0.0
  %1520 = vmatprep.subr.mxu0 0.0
  %1521 = vmatpush1.msra.mxu0 0.0
  %1522 = vmatprep.subr.mxu0 0.0
  %1523 = vmatpush1.msra.mxu0 0.0
  %1524 = vmatprep.subr.mxu0 0.0
  %1525 = vmatpush1.msra.mxu0 0.0
  %1526 = vmatprep.subr.mxu0 0.0
  %1527 = vmatpush1.msra.mxu0 0.0
  %1528 = vmatprep.subr.mxu0 0.0
  %1529 = vmatpush1.msra.mxu0 0.0
  %1530 = vmatprep.subr.mxu0 0.0
  %1531 = vmatpush1.msra.mxu0 0.0
  %1532 = vmatprep.subr.mxu0 0.0
  %1533 = vmatpush1.msra.mxu0 0.0
  %1534 = vmatprep.subr.mxu0 0.0
  %1535 = vmatpush1.msra.mxu0 0.0
  %1536 = vmatprep.subr.mxu0 0.0
  %1537 = vmatpush1.msra.mxu0 0.0
  %1538 = vmatprep.subr.mxu0 0.0
  %1539 = vmatpush1.msra.mxu0 0.0
  %1540 = vmatprep.subr.mxu0 0.0
  %1541 = vmatpush1.msra.mxu0 0.0
  %1542 = vmatprep.subr.mxu0 0.0
  %1543 = vmatpush1.msra.mxu0 0.0
  %1544 = vmatprep.subr.mxu0 0.0
  %1545 = vmatpush1.msra.mxu0 0.0
  %1546 = vmatprep.subr.mxu0 0.0
  %1547 = vmatpush1.msra.mxu0 0.0
  %1548 = vmatprep.mubr.f32.mxu0 0.0
  %1549 = vmatmul.mubr.f32.gmra.mrb[0].mxu0 %v1479
  %v1550 = vpop.f32.mrb[0].mxu0
  %v1551 = vadd.f32 0.0, %v1550
  %v1552 = vpop.f32.mrb[0].mxu0
  %1553 = vmatprep.mubr.f32.mxu0 0.0
  %1554 = vmatmul.mubr.f32.gmra.mrb[0].mxu0 %v1482
  %v1555 = vpop.f32.mrb[0].mxu0
  %v1556 = vadd.f32 0.0, %v1555
  %v1557 = vpop.f32.mrb[0].mxu0
  %1558 = vdwg.mxu0
  %1559 = vrot.lane.b32.xlu0 %v1351, 112
  %v1560 = vpop.permute.xlu0 %1559
  %1561 = vrot.lane.b32.xlu0 %v1354, 112
  %v1562 = vpop.permute.xlu0 %1561
  %1563 = vrot.lane.b32.xlu0 %v1351, 80
  %v1564 = vpop.permute.xlu0 %1563
  %1565 = vrot.lane.b32.xlu0 %v1354, 80
  %v1566 = vpop.permute.xlu0 %1565
  %v1567 = vsel %vm35, %v1560, 0
  %v1569 = vsel %vm35, %v1562, 0
  %v1571 = vsel %vm35, %v1564, 0
  %v1573 = vsel %vm35, %v1566, 0
  %1575 = vmatprep.subr.mxu0 0.0
  %1576 = vmatpush1.xpose.msra.mxu0 %v1571
  %1577 = vmatprep.subr.mxu0 0.0
  %1578 = vmatpush1.xpose.msra.mxu0 %v1573
  %1579 = vmatprep.subr.mxu0 0.0
  %1580 = vmatpush1.xpose.msra.mxu0 0.0
  %1581 = vmatprep.subr.mxu0 0.0
  %1582 = vmatpush1.xpose.msra.mxu0 0.0
  %1583 = vmatprep.subr.mxu0 0.0
  %1584 = vmatpush1.xpose.msra.mxu0 0.0
  %1585 = vmatprep.subr.mxu0 0.0
  %1586 = vmatpush1.xpose.msra.mxu0 0.0
  %1587 = vmatprep.subr.mxu0 0.0
  %1588 = vmatpush1.xpose.msra.mxu0 0.0
  %1589 = vmatprep.subr.mxu0 0.0
  %1590 = vmatpush1.xpose.msra.mxu0 0.0
  %1591 = vmatprep.subr.mxu0 0.0
  %1592 = vmatpush1.xpose.msra.mxu0 0.0
  %1593 = vmatprep.subr.mxu0 0.0
  %1594 = vmatpush1.xpose.msra.mxu0 0.0
  %1595 = vmatprep.subr.mxu0 0.0
  %1596 = vmatpush1.xpose.msra.mxu0 0.0
  %1597 = vmatprep.subr.mxu0 0.0
  %1598 = vmatpush1.xpose.msra.mxu0 0.0
  %1599 = vmatprep.subr.mxu0 0.0
  %1600 = vmatpush1.xpose.msra.mxu0 0.0
  %1601 = vmatprep.subr.mxu0 0.0
  %1602 = vmatpush1.xpose.msra.mxu0 0.0
  %1603 = vmatprep.subr.mxu0 0.0
  %1604 = vmatpush1.xpose.msra.mxu0 0.0
  %1605 = vmatprep.subr.mxu0 0.0
  %1606 = vmatpush1.xpose.msra.mxu0 0.0
  %1607 = vmatprep.subr.mxu0 0.0
  %1608 = vmatpush1.xpose.msra.mxu0 0.0
  %1609 = vmatprep.subr.mxu0 0.0
  %1610 = vmatpush1.xpose.msra.mxu0 0.0
  %1611 = vmatprep.subr.mxu0 0.0
  %1612 = vmatpush1.xpose.msra.mxu0 0.0
  %1613 = vmatprep.subr.mxu0 0.0
  %1614 = vmatpush1.xpose.msra.mxu0 0.0
  %1615 = vmatprep.subr.mxu0 0.0
  %1616 = vmatpush1.xpose.msra.mxu0 0.0
  %1617 = vmatprep.subr.mxu0 0.0
  %1618 = vmatpush1.xpose.msra.mxu0 0.0
  %1619 = vmatprep.subr.mxu0 0.0
  %1620 = vmatpush1.xpose.msra.mxu0 0.0
  %1621 = vmatprep.subr.mxu0 0.0
  %1622 = vmatpush1.xpose.msra.mxu0 0.0
  %1623 = vmatprep.subr.mxu0 0.0
  %1624 = vmatpush1.xpose.msra.mxu0 0.0
  %1625 = vmatprep.subr.mxu0 0.0
  %1626 = vmatpush1.xpose.msra.mxu0 0.0
  %1627 = vmatprep.subr.mxu0 0.0
  %1628 = vmatpush1.xpose.msra.mxu0 0.0
  %1629 = vmatprep.subr.mxu0 0.0
  %1630 = vmatpush1.xpose.msra.mxu0 0.0
  %1631 = vmatprep.subr.mxu0 0.0
  %1632 = vmatpush1.xpose.msra.mxu0 0.0
  %1633 = vmatprep.subr.mxu0 0.0
  %1634 = vmatpush1.xpose.msra.mxu0 0.0
  %1635 = vmatprep.subr.mxu0 0.0
  %1636 = vmatpush1.xpose.msra.mxu0 0.0
  %1637 = vmatprep.subr.mxu0 0.0
  %1638 = vmatpush1.xpose.msra.mxu0 0.0
  %1639 = vmatprep.mubr.f32.mxu0 0.0
  %1640 = vmatmul.mubr.f32.gmra.mrb[0].mxu0 %v1567
  %v1641 = vpop.f32.mrb[0].mxu0
  %v1642 = vadd.f32 0.0, %v1641
  %v1643 = vpop.f32.mrb[0].mxu0
  %1644 = vmatprep.mubr.f32.mxu0 0.0
  %1645 = vmatmul.mubr.f32.gmra.mrb[0].mxu0 %v1569
  %v1646 = vpop.f32.mrb[0].mxu0
  %v1647 = vadd.f32 0.0, %v1646
  %v1648 = vpop.f32.mrb[0].mxu0
  %1649 = vdwg.mxu0
  %v1650 = vmul.f32 %v1642, 0.25
  %v1651 = vmul.f32 %v1647, 0.25
  %v1652 = vadd.f32 %v1650, %v521
  %v1653 = vadd.f32 %v1651, %v522
  %v1654 = vsel %vm35, %v1652, -inf
  %1655 = vmax.xlane.f32.xlu0 %v1654
  %v1656 = vpop.xlane.xlu0 %1655
  %v1657 = vsel %vm35, %v1653, -inf
  %1658 = vmax.xlane.f32.xlu0 %v1657
  %v1659 = vpop.xlane.xlu0 %1658
  %v1660 = vsub.f32 %v1652, %v1656
  %v1661 = vsub.f32 %v1653, %v1659
  %v1662 = vmul.f32 %v1660, 1.442695
  %v1663 = vpow.pop %v1662
  %v1664 = vmul.f32 %v1661, 1.442695
  %v1665 = vpow.pop %v1664
  %v1666 = vsel %vm35, %v1663, 0.0
  %1667 = vadd.xlane.f32.xlu0 %v1666
  %v1668 = vpop.xlane.xlu0 %1667
  %v1669 = vsel %vm35, %v1665, 0.0
  %1670 = vadd.xlane.f32.xlu0 %v1669
  %v1671 = vpop.xlane.xlu0 %1670
  %v1672 = vrcp.pop %v1668
  %v1673 = vrcp.pop %v1671
  %v1674 = vmul.f32 %v1663, %v1672
  %v1675 = vmul.f32 %v1665, %v1673
  %1676 = vrot.lane.b32.xlu0 %v1351, 48
  %v1677 = vpop.permute.xlu0 %1676
  %1678 = vrot.lane.b32.xlu0 %v1354, 48
  %v1679 = vpop.permute.xlu0 %1678
  %v1683 = vsel %vm35, %v1674, 0
  %v1686 = vsel %vm35, %v1675, 0
  %1688 = vmatprep.subr.mxu0 0.0
  %1689 = vmatpush1.msra.mxu0 %v1677
  %1690 = vmatprep.subr.mxu0 0.0
  %1691 = vmatpush1.msra.mxu0 %v1679
  %1692 = vmatprep.subr.mxu0 0.0
  %1693 = vmatpush1.msra.mxu0 0.0
  %1694 = vmatprep.subr.mxu0 0.0
  %1695 = vmatpush1.msra.mxu0 0.0
  %1696 = vmatprep.subr.mxu0 0.0
  %1697 = vmatpush1.msra.mxu0 0.0
  %1698 = vmatprep.subr.mxu0 0.0
  %1699 = vmatpush1.msra.mxu0 0.0
  %1700 = vmatprep.subr.mxu0 0.0
  %1701 = vmatpush1.msra.mxu0 0.0
  %1702 = vmatprep.subr.mxu0 0.0
  %1703 = vmatpush1.msra.mxu0 0.0
  %1704 = vmatprep.subr.mxu0 0.0
  %1705 = vmatpush1.msra.mxu0 0.0
  %1706 = vmatprep.subr.mxu0 0.0
  %1707 = vmatpush1.msra.mxu0 0.0
  %1708 = vmatprep.subr.mxu0 0.0
  %1709 = vmatpush1.msra.mxu0 0.0
  %1710 = vmatprep.subr.mxu0 0.0
  %1711 = vmatpush1.msra.mxu0 0.0
  %1712 = vmatprep.subr.mxu0 0.0
  %1713 = vmatpush1.msra.mxu0 0.0
  %1714 = vmatprep.subr.mxu0 0.0
  %1715 = vmatpush1.msra.mxu0 0.0
  %1716 = vmatprep.subr.mxu0 0.0
  %1717 = vmatpush1.msra.mxu0 0.0
  %1718 = vmatprep.subr.mxu0 0.0
  %1719 = vmatpush1.msra.mxu0 0.0
  %1720 = vmatprep.subr.mxu0 0.0
  %1721 = vmatpush1.msra.mxu0 0.0
  %1722 = vmatprep.subr.mxu0 0.0
  %1723 = vmatpush1.msra.mxu0 0.0
  %1724 = vmatprep.subr.mxu0 0.0
  %1725 = vmatpush1.msra.mxu0 0.0
  %1726 = vmatprep.subr.mxu0 0.0
  %1727 = vmatpush1.msra.mxu0 0.0
  %1728 = vmatprep.subr.mxu0 0.0
  %1729 = vmatpush1.msra.mxu0 0.0
  %1730 = vmatprep.subr.mxu0 0.0
  %1731 = vmatpush1.msra.mxu0 0.0
  %1732 = vmatprep.subr.mxu0 0.0
  %1733 = vmatpush1.msra.mxu0 0.0
  %1734 = vmatprep.subr.mxu0 0.0
  %1735 = vmatpush1.msra.mxu0 0.0
  %1736 = vmatprep.subr.mxu0 0.0
  %1737 = vmatpush1.msra.mxu0 0.0
  %1738 = vmatprep.subr.mxu0 0.0
  %1739 = vmatpush1.msra.mxu0 0.0
  %1740 = vmatprep.subr.mxu0 0.0
  %1741 = vmatpush1.msra.mxu0 0.0
  %1742 = vmatprep.subr.mxu0 0.0
  %1743 = vmatpush1.msra.mxu0 0.0
  %1744 = vmatprep.subr.mxu0 0.0
  %1745 = vmatpush1.msra.mxu0 0.0
  %1746 = vmatprep.subr.mxu0 0.0
  %1747 = vmatpush1.msra.mxu0 0.0
  %1748 = vmatprep.subr.mxu0 0.0
  %1749 = vmatpush1.msra.mxu0 0.0
  %1750 = vmatprep.subr.mxu0 0.0
  %1751 = vmatpush1.msra.mxu0 0.0
  %1752 = vmatprep.mubr.f32.mxu0 0.0
  %1753 = vmatmul.mubr.f32.gmra.mrb[0].mxu0 %v1683
  %v1754 = vpop.f32.mrb[0].mxu0
  %v1755 = vadd.f32 0.0, %v1754
  %v1756 = vpop.f32.mrb[0].mxu0
  %1757 = vmatprep.mubr.f32.mxu0 0.0
  %1758 = vmatmul.mubr.f32.gmra.mrb[0].mxu0 %v1686
  %v1759 = vpop.f32.mrb[0].mxu0
  %v1760 = vadd.f32 0.0, %v1759
  %v1761 = vpop.f32.mrb[0].mxu0
  %1762 = vdwg.mxu0
  %1765 = vrot.lane.b32.xlu0 %v1755, 16
  %v1766 = vpop.permute.xlu0 %1765
  %1767 = vrot.lane.b32.xlu0 %v1760, 16
  %v1768 = vpop.permute.xlu0 %1767
  %v1771 = vsel %vm35, %v1551, %v1766
  %v1772 = vsel %vm35, %v1556, %v1768
  %s1773 = scalar_lea.vmem %s6, 16
  %v1774 = vld [vmem:[%s1773] sm:$0xf]
  %v1775 = vld [vmem:[%s1773 + $0x4] sm:$0xf]
  %v1776 = vld [vmem:[%s1773 + $0x8] sm:$0xf]
  %v1777 = vld [vmem:[%s1773 + $0xc] sm:$0xf]
  %v1778 = vpack.c.bf16 %v1772, %v1771
  %v1779 = vlaneseq
  %v1780 = vshrl.u32 %v1779, 7
  %v1781 = vsub.s32 1, %v1780
  %v1782 = vrot.slane %v1290, %v1781
  %v1787 = vunpack.c.l.b16 %v1774
  %v1788 = vunpack.c.l.b16 %v1775
  %v1789 = vunpack.c.l.b16 %v1776
  %v1790 = vunpack.c.l.b16 %v1777
  %v1791 = vpack.c.b16 %v1788, %v1787
  %v1792 = vpack.c.b16 %v1790, %v1789
  %v1796 = vsel %vm196, %v1778, 0
  %1798 = vmatprep.subr.bf16.mxu0 0
  %1799 = vmatpush1.bf16.msra.mxu0 %v1791
  %1800 = vmatprep.subr.bf16.mxu0 0
  %1801 = vmatpush1.bf16.msra.mxu0 %v1792
  %1802 = vmatprep.subr.bf16.mxu0 0
  %1803 = vmatpush1.bf16.msra.mxu0 0
  %1804 = vmatprep.subr.bf16.mxu0 0
  %1805 = vmatpush1.bf16.msra.mxu0 0
  %1806 = vmatprep.subr.bf16.mxu0 0
  %1807 = vmatpush1.bf16.msra.mxu0 0
  %1808 = vmatprep.subr.bf16.mxu0 0
  %1809 = vmatpush1.bf16.msra.mxu0 0
  %1810 = vmatprep.subr.bf16.mxu0 0
  %1811 = vmatpush1.bf16.msra.mxu0 0
  %1812 = vmatprep.subr.bf16.mxu0 0
  %1813 = vmatpush1.bf16.msra.mxu0 0
  %1814 = vmatprep.subr.bf16.mxu0 0
  %1815 = vmatpush1.bf16.msra.mxu0 0
  %1816 = vmatprep.subr.bf16.mxu0 0
  %1817 = vmatpush1.bf16.msra.mxu0 0
  %1818 = vmatprep.subr.bf16.mxu0 0
  %1819 = vmatpush1.bf16.msra.mxu0 0
  %1820 = vmatprep.subr.bf16.mxu0 0
  %1821 = vmatpush1.bf16.msra.mxu0 0
  %1822 = vmatprep.subr.bf16.mxu0 0
  %1823 = vmatpush1.bf16.msra.mxu0 0
  %1824 = vmatprep.subr.bf16.mxu0 0
  %1825 = vmatpush1.bf16.msra.mxu0 0
  %1826 = vmatprep.subr.bf16.mxu0 0
  %1827 = vmatpush1.bf16.msra.mxu0 0
  %1828 = vmatprep.subr.bf16.mxu0 0
  %1829 = vmatpush1.bf16.msra.mxu0 0
  %1830 = vmatprep.mubr.bf16.mxu0 0
  %1831 = vmatmul.mubr.bf16.gmra.mrb[0].mxu0 %v1796
  %v1832 = vpop.f32.mrb[0].mxu0
  %v1833 = vadd.f32 %v1782, %v1832
  %v1834 = vpop.f32.mrb[0].mxu0
  %v1835 = vpop.f32.mrb[0].mxu0
  %v1836 = vadd.f32 %v1782, %v1835
  %v1837 = vpop.f32.mrb[0].mxu0
  %1838 = vdwg.mxu0
  %v1839 = vadd.f32 %v1833, %v1287
  %v1840 = vadd.f32 %v1836, %v1288
  %v1841 = vsel %vm196, %v1839, 0.0
  %1842 = vadd.xlane.f32.xlu0 %v1841
  %v1843 = vpop.xlane.xlu0 %1842
  %v1844 = vsel %vm196, %v1840, 0.0
  %1845 = vadd.xlane.f32.xlu0 %v1844
  %v1846 = vpop.xlane.xlu0 %1845
  %v1847 = vmul.f32 %v1843, %v1078
  %v1848 = vmul.f32 %v1846, %v1078
  %v1849 = vsub.f32 %v1839, %v1847
  %v1850 = vsub.f32 %v1840, %v1848
  %v1851 = vmul.f32 %v1849, %v1849
  %v1852 = vmul.f32 %v1850, %v1850
  %v1853 = vsel %vm196, %v1851, 0.0
  %1854 = vadd.xlane.f32.xlu0 %v1853
  %v1855 = vpop.xlane.xlu0 %1854
  %v1856 = vsel %vm196, %v1852, 0.0
  %1857 = vadd.xlane.f32.xlu0 %v1856
  %v1858 = vpop.xlane.xlu0 %1857
  %v1859 = vmul.f32 %v1855, %v1078
  %v1860 = vmul.f32 %v1858, %v1078
  %v1861 = vadd.f32 %v1859, 1e-05
  %v1862 = vadd.f32 %v1860, 1e-05
  %v1863 = vrsqrt.pop %v1861
  %v1864 = vrsqrt.pop %v1862
  %v1865 = vmul.f32 %v1849, %v1863
  %v1866 = vmul.f32 %v1850, %v1864
  %v1867 = vlaneseq
  %v1868 = vshrl.u32 %v1867, 7
  %v1869 = vsub.s32 2, %v1868
  %v1870 = vrot.slane %v1290, %v1869
  %v1871 = vmul.f32 %v1865, %v1870
  %v1872 = vmul.f32 %v1866, %v1870
  %v1873 = vlaneseq
  %v1874 = vshrl.u32 %v1873, 7
  %v1875 = vsub.s32 3, %v1874
  %v1876 = vrot.slane %v1290, %v1875
  %v1877 = vadd.f32 %v1871, %v1876
  %v1878 = vadd.f32 %v1872, %v1876
  %v1879 = vpack.c.bf16 %v1878, %v1877
  %v1880 = vlaneseq
  %v1881 = vshrl.u32 %v1880, 7
  %v1882 = vsub.s32 4, %v1881
  %v1883 = vrot.slane %v1290, %v1882
  %1884 = vrot.lane.b32.xlu0 %v1791, 96
  %v1885 = vpop.permute.xlu0 %1884
  %1886 = vrot.lane.b32.xlu0 %v1792, 96
  %v1887 = vpop.permute.xlu0 %1886
  %v1891 = vsel %vm196, %v1879, 0
  %1893 = vmatprep.subr.bf16.mxu0 0
  %1894 = vmatpush1.bf16.msra.mxu0 %v1885
  %1895 = vmatprep.subr.bf16.mxu0 0
  %1896 = vmatpush1.bf16.msra.mxu0 %v1887
  %1897 = vmatprep.subr.bf16.mxu0 0
  %1898 = vmatpush1.bf16.msra.mxu0 0
  %1899 = vmatprep.subr.bf16.mxu0 0
  %1900 = vmatpush1.bf16.msra.mxu0 0
  %1901 = vmatprep.subr.bf16.mxu0 0
  %1902 = vmatpush1.bf16.msra.mxu0 0
  %1903 = vmatprep.subr.bf16.mxu0 0
  %1904 = vmatpush1.bf16.msra.mxu0 0
  %1905 = vmatprep.subr.bf16.mxu0 0
  %1906 = vmatpush1.bf16.msra.mxu0 0
  %1907 = vmatprep.subr.bf16.mxu0 0
  %1908 = vmatpush1.bf16.msra.mxu0 0
  %1909 = vmatprep.subr.bf16.mxu0 0
  %1910 = vmatpush1.bf16.msra.mxu0 0
  %1911 = vmatprep.subr.bf16.mxu0 0
  %1912 = vmatpush1.bf16.msra.mxu0 0
  %1913 = vmatprep.subr.bf16.mxu0 0
  %1914 = vmatpush1.bf16.msra.mxu0 0
  %1915 = vmatprep.subr.bf16.mxu0 0
  %1916 = vmatpush1.bf16.msra.mxu0 0
  %1917 = vmatprep.subr.bf16.mxu0 0
  %1918 = vmatpush1.bf16.msra.mxu0 0
  %1919 = vmatprep.subr.bf16.mxu0 0
  %1920 = vmatpush1.bf16.msra.mxu0 0
  %1921 = vmatprep.subr.bf16.mxu0 0
  %1922 = vmatpush1.bf16.msra.mxu0 0
  %1923 = vmatprep.subr.bf16.mxu0 0
  %1924 = vmatpush1.bf16.msra.mxu0 0
  %1925 = vmatprep.mubr.bf16.mxu0 0
  %1926 = vmatmul.mubr.bf16.gmra.mrb[0].mxu0 %v1891
  %v1927 = vpop.f32.mrb[0].mxu0
  %v1928 = vadd.f32 %v1883, %v1927
  %v1929 = vpop.f32.mrb[0].mxu0
  %v1930 = vpop.f32.mrb[0].mxu0
  %v1931 = vadd.f32 %v1883, %v1930
  %v1932 = vpop.f32.mrb[0].mxu0
  %1933 = vdwg.mxu0
  %v1934 = vmax.f32 %v1928, 0.0
  %v1935 = vmax.f32 %v1931, 0.0
  %v1936 = vpack.c.bf16 %v1935, %v1934
  %s1937 = scalar_lea.vmem %s7, 32
  %v1938 = vld [vmem:[%s1937] sm:$0xf]
  %v1939 = vld [vmem:[%s1937 + $0x4] sm:$0xf]
  %v1940 = vld [vmem:[%s1937 + $0x8] sm:$0xf]
  %v1941 = vld [vmem:[%s1937 + $0xc] sm:$0xf]
  %v1942 = vld [vmem:[%s1937 + $0x10] sm:$0xf]
  %v1943 = vld [vmem:[%s1937 + $0x14] sm:$0xf]
  %v1944 = vld [vmem:[%s1937 + $0x18] sm:$0xf]
  %v1945 = vld [vmem:[%s1937 + $0x1c] sm:$0xf]
  %v1946 = vlaneseq
  %v1947 = vshrl.u32 %v1946, 7
  %v1948 = vsub.s32 5, %v1947
  %v1949 = vrot.slane %v1290, %v1948
  %v1958 = vunpack.c.l.b16 %v1938
  %v1959 = vunpack.c.l.b16 %v1939
  %v1960 = vunpack.c.l.b16 %v1940
  %v1961 = vunpack.c.l.b16 %v1941
  %v1962 = vunpack.c.l.b16 %v1942
  %v1963 = vunpack.c.l.b16 %v1943
  %v1964 = vunpack.c.l.b16 %v1944
  %v1965 = vunpack.c.l.b16 %v1945
  %v1966 = vpack.c.b16 %v1959, %v1958
  %v1967 = vpack.c.b16 %v1961, %v1960
  %v1968 = vpack.c.b16 %v1963, %v1962
  %v1969 = vpack.c.b16 %v1965, %v1964
  %v1975 = vsel %vm339, %v1936, 0
  %1977 = vmatprep.subr.bf16.mxu0 0
  %1978 = vmatpush1.bf16.msra.mxu0 %v1966
  %1979 = vmatprep.subr.bf16.mxu0 0
  %1980 = vmatpush1.bf16.msra.mxu0 %v1967
  %1981 = vmatprep.subr.bf16.mxu0 0
  %1982 = vmatpush1.bf16.msra.mxu0 %v1968
  %1983 = vmatprep.subr.bf16.mxu0 0
  %1984 = vmatpush1.bf16.msra.mxu0 %v1969
  %1985 = vmatprep.subr.bf16.mxu0 0
  %1986 = vmatpush1.bf16.msra.mxu0 0
  %1987 = vmatprep.subr.bf16.mxu0 0
  %1988 = vmatpush1.bf16.msra.mxu0 0
  %1989 = vmatprep.subr.bf16.mxu0 0
  %1990 = vmatpush1.bf16.msra.mxu0 0
  %1991 = vmatprep.subr.bf16.mxu0 0
  %1992 = vmatpush1.bf16.msra.mxu0 0
  %1993 = vmatprep.subr.bf16.mxu0 0
  %1994 = vmatpush1.bf16.msra.mxu0 0
  %1995 = vmatprep.subr.bf16.mxu0 0
  %1996 = vmatpush1.bf16.msra.mxu0 0
  %1997 = vmatprep.subr.bf16.mxu0 0
  %1998 = vmatpush1.bf16.msra.mxu0 0
  %1999 = vmatprep.subr.bf16.mxu0 0
  %2000 = vmatpush1.bf16.msra.mxu0 0
  %2001 = vmatprep.subr.bf16.mxu0 0
  %2002 = vmatpush1.bf16.msra.mxu0 0
  %2003 = vmatprep.subr.bf16.mxu0 0
  %2004 = vmatpush1.bf16.msra.mxu0 0
  %2005 = vmatprep.subr.bf16.mxu0 0
  %2006 = vmatpush1.bf16.msra.mxu0 0
  %2007 = vmatprep.subr.bf16.mxu0 0
  %2008 = vmatpush1.bf16.msra.mxu0 0
  %2009 = vmatprep.mubr.bf16.mxu0 0
  %2010 = vmatmul.mubr.bf16.gmra.mrb[0].mxu0 %v1975
  %v2011 = vpop.f32.mrb[0].mxu0
  %v2012 = vadd.f32 %v1949, %v2011
  %v2013 = vpop.f32.mrb[0].mxu0
  %v2014 = vpop.f32.mrb[0].mxu0
  %v2015 = vadd.f32 %v1949, %v2014
  %v2016 = vpop.f32.mrb[0].mxu0
  %2017 = vdwg.mxu0
  %v2018 = vadd.f32 %v2012, %v1877
  %v2019 = vadd.f32 %v2015, %v1878
  %v2020 = vsel %vm196, %v2018, 0.0
  %2021 = vadd.xlane.f32.xlu0 %v2020
  %v2022 = vpop.xlane.xlu0 %2021
  %v2023 = vsel %vm196, %v2019, 0.0
  %2024 = vadd.xlane.f32.xlu0 %v2023
  %v2025 = vpop.xlane.xlu0 %2024
  %v2026 = vmul.f32 %v2022, %v1078
  %v2027 = vmul.f32 %v2025, %v1078
  %v2028 = vsub.f32 %v2018, %v2026
  %v2029 = vsub.f32 %v2019, %v2027
  %v2030 = vmul.f32 %v2028, %v2028
  %v2031 = vmul.f32 %v2029, %v2029
  %v2032 = vsel %vm196, %v2030, 0.0
  %2033 = vadd.xlane.f32.xlu0 %v2032
  %v2034 = vpop.xlane.xlu0 %2033
  %v2035 = vsel %vm196, %v2031, 0.0
  %2036 = vadd.xlane.f32.xlu0 %v2035
  %v2037 = vpop.xlane.xlu0 %2036
  %v2038 = vmul.f32 %v2034, %v1078
  %v2039 = vmul.f32 %v2037, %v1078
  %v2040 = vadd.f32 %v2038, 1e-05
  %v2041 = vadd.f32 %v2039, 1e-05
  %v2042 = vrsqrt.pop %v2040
  %v2043 = vrsqrt.pop %v2041
  %v2044 = vmul.f32 %v2028, %v2042
  %v2045 = vmul.f32 %v2029, %v2043
  %v2046 = vlaneseq
  %v2047 = vshrl.u32 %v2046, 7
  %v2048 = vsub.s32 6, %v2047
  %v2049 = vrot.slane %v1290, %v2048
  %v2050 = vmul.f32 %v2044, %v2049
  %v2051 = vmul.f32 %v2045, %v2049
  %v2052 = vlaneseq
  %v2053 = vshrl.u32 %v2052, 7
  %v2054 = vsub.s32 7, %v2053
  %v2055 = vrot.slane %v1290, %v2054
  %v2056 = vadd.f32 %v2050, %v2055
  %v2057 = vadd.f32 %v2051, %v2055
  %v2058 = vpack.c.bf16 %v2057, %v2056
  %v2059 = vld [vmem:[%s3 + $0x10] sm:$0xf]
  %v2060 = vld [vmem:[%s3 + $0x14] sm:$0xf]
  %v2061 = vld [vmem:[%s3 + $0x18] sm:$0xf]
  %v2062 = vld [vmem:[%s3 + $0x1c] sm:$0xf]
  %v2063 = vld [vmem:[%s4 + $0x3] sm:$0x1]
  %v2064 = vlaneseq
  %v2065 = vshrl.u32 %v2064, 7
  %v2066 = vsub.s32 0, %v2065
  %v2067 = vrot.slane %v2063, %v2066
  %v2072 = vunpack.c.l.b16 %v2059
  %v2073 = vunpack.c.l.b16 %v2060
  %v2074 = vunpack.c.l.b16 %v2061
  %v2075 = vunpack.c.l.b16 %v2062
  %v2076 = vpack.c.b16 %v2073, %v2072
  %v2077 = vpack.c.b16 %v2075, %v2074
  %v2081 = vsel %vm196, %v2058, 0
  %2083 = vmatprep.subr.bf16.mxu0 0
  %2084 = vmatpush1.bf16.msra.mxu0 %v2076
  %2085 = vmatprep.subr.bf16.mxu0 0
  %2086 = vmatpush1.bf16.msra.mxu0 %v2077
  %2087 = vmatprep.subr.bf16.mxu0 0
  %2088 = vmatpush1.bf16.msra.mxu0 0
  %2089 = vmatprep.subr.bf16.mxu0 0
  %2090 = vmatpush1.bf16.msra.mxu0 0
  %2091 = vmatprep.subr.bf16.mxu0 0
  %2092 = vmatpush1.bf16.msra.mxu0 0
  %2093 = vmatprep.subr.bf16.mxu0 0
  %2094 = vmatpush1.bf16.msra.mxu0 0
  %2095 = vmatprep.subr.bf16.mxu0 0
  %2096 = vmatpush1.bf16.msra.mxu0 0
  %2097 = vmatprep.subr.bf16.mxu0 0
  %2098 = vmatpush1.bf16.msra.mxu0 0
  %2099 = vmatprep.subr.bf16.mxu0 0
  %2100 = vmatpush1.bf16.msra.mxu0 0
  %2101 = vmatprep.subr.bf16.mxu0 0
  %2102 = vmatpush1.bf16.msra.mxu0 0
  %2103 = vmatprep.subr.bf16.mxu0 0
  %2104 = vmatpush1.bf16.msra.mxu0 0
  %2105 = vmatprep.subr.bf16.mxu0 0
  %2106 = vmatpush1.bf16.msra.mxu0 0
  %2107 = vmatprep.subr.bf16.mxu0 0
  %2108 = vmatpush1.bf16.msra.mxu0 0
  %2109 = vmatprep.subr.bf16.mxu0 0
  %2110 = vmatpush1.bf16.msra.mxu0 0
  %2111 = vmatprep.subr.bf16.mxu0 0
  %2112 = vmatpush1.bf16.msra.mxu0 0
  %2113 = vmatprep.subr.bf16.mxu0 0
  %2114 = vmatpush1.bf16.msra.mxu0 0
  %2115 = vmatprep.mubr.bf16.mxu0 0
  %2116 = vmatmul.mubr.bf16.gmra.mrb[0].mxu0 %v2081
  %v2117 = vpop.f32.mrb[0].mxu0
  %v2118 = vadd.f32 %v2067, %v2117
  %v2119 = vpop.f32.mrb[0].mxu0
  %v2120 = vpop.f32.mrb[0].mxu0
  %v2121 = vadd.f32 %v2067, %v2120
  %v2122 = vpop.f32.mrb[0].mxu0
  %2123 = vdwg.mxu0
  %v2124 = vsel %vm196, %v2056, 0.0
  %v2125 = vsel %vm196, %v2057, 0.0
  %2126 = vst [vmem:[%s9] sm:$0xff] %v241
  %2127 = vst [vmem:[%s9 + $0x8] sm:$0xff] %v2124
  %2128 = vst [vmem:[%s9 + $0x10] sm:$0xff] %v2118
  %2129 = vst [vmem:[%s9 + $0x18] sm:$0xff] %v242
  %2130 = vst [vmem:[%s9 + $0x20] sm:$0xff] %v2125
  %2131 = vst [vmem:[%s9 + $0x28] sm:$0xff] %v2121
  // Predicated region
  $region38: #{transformer_obj_context_forward.1} parent=0 // pred_check
    _
  $region39: #{transformer_obj_context_forward.1} parent=0 // pred_check_branch
    %2133 = sbr.rel (0) target = $region41
  $region40: #{transformer_obj_context_forward.1} parent=0 // pred_region
    _
  $region41: #{transformer_obj_context_forward.1} parent=0 // pred_fallthru
    _
  // Predicated region
  $region42: #{transformer_obj_context_forward.1} parent=0 // pred_check
    _
  $region43: #{transformer_obj_context_forward.1} parent=0 // pred_check_branch
    %2135 = sbr.rel (0) target = $region45
  $region44: #{transformer_obj_context_forward.1} parent=0 // pred_region
    _
  $region45: #{transformer_obj_context_forward.1} parent=0 // pred_fallthru
    _

</llo_original>
